<compile_context>
chip_gen: v7x
topology: tpu7x:2x2x1
jax: 0.10.0
libtpu: 0.0.40
codegen_flags: <defaults>
</compile_context>

<pallas_src>
import functools

import jax
import jax.numpy as jnp
from jax.experimental import pallas as pl
from jax.experimental.pallas import tpu as pltpu


_LN_EPS = 1e-5


def _vmem_limit_bytes():
    """Per-chip scoped-VMEM limit: leave headroom under the physical VMEM."""
    try:
        kind = jax.devices()[0].device_kind.lower()
    except Exception:  # pragma: no cover - conservative fallback
        return 48 * 1024 * 1024
    if "v5" in kind or "v6" in kind:
        return 96 * 1024 * 1024        # 128 MiB physical VMEM
    return 48 * 1024 * 1024            # v7x: 64 MiB per TensorCore


_VMEM_LIMIT = _vmem_limit_bytes()


# ----------------------------------------------------------------------------
# In-kernel math helpers (f32)
# ----------------------------------------------------------------------------
def _gelu_tanh(x):
    # tanh-approx GELU; tanh lowers to the EUP slot.
    c = 0.7978845608028654  # sqrt(2/pi)
    return 0.5 * x * (1.0 + jnp.tanh(c * (x + 0.044715 * x * x * x)))


def _layernorm_f32(x, g, b, eps=_LN_EPS):
    mu = jnp.mean(x, axis=-1, keepdims=True)
    var = jnp.mean(jnp.square(x - mu), axis=-1, keepdims=True)
    return (x - mu) * jax.lax.rsqrt(var + eps) * g + b


# ----------------------------------------------------------------------------
# Depth-fused predictor kernel: one grid step = (batch element b, layer d)
# ----------------------------------------------------------------------------
def _predictor_kernel(x_ref, proj_w_ref,
                      ln1_g_ref, ln1_b_ref, qkv_w_ref, pw_ref, pb_ref,
                      ln2_g_ref, ln2_b_ref, fc1_w_ref, fc1_b_ref,
                      fc2_w_ref, fc2_b_ref, ng_ref, nb_ref,
                      o_ref, y_vmem, attn_acc,
                      *, num_heads, head_dim, model_dim, scale):
    d = pl.program_id(1)

    # ---- input projection (only at the first layer of each batch element) --
    @pl.when(d == 0)
    def _project():
        x = x_ref[0].astype(jnp.bfloat16)                       # [N, Din]
        y_vmem[...] = jnp.dot(x, proj_w_ref[...],
                              preferred_element_type=jnp.float32)

    y = y_vmem[...]                                             # [N, D] f32

    # ---- attention branch: y += proj(attn(LN1(y))) + proj_b ---------------
    h = _layernorm_f32(y, ln1_g_ref[0], ln1_b_ref[0])
    qkv = jnp.dot(h.astype(jnp.bfloat16), qkv_w_ref[0],
                  preferred_element_type=jnp.float32)           # [N, 3D] f32

    # scale q and cast q/k/v to bf16 exactly once (whole [N, D] slabs)
    q_all = (qkv[:, :model_dim] * scale).astype(jnp.bfloat16)
    k_all = qkv[:, model_dim:2 * model_dim].astype(jnp.bfloat16)
    v_all = qkv[:, 2 * model_dim:].astype(jnp.bfloat16)

    # per-head attention; each head writes its [N, hd] result into a static
    # lane slice of the VMEM scratch slab (no list + concatenate relayout).
    for hh in range(num_heads):
        lo = hh * head_dim
        hi = lo + head_dim
        s = jnp.einsum("qd,kd->qk", q_all[:, lo:hi], k_all[:, lo:hi],
                       preferred_element_type=jnp.float32)      # [N, N] f32
        m = jnp.max(s, axis=-1, keepdims=True)
        p = jnp.exp(s - m)
        p = p * pl.reciprocal(jnp.sum(p, axis=-1, keepdims=True), approx=True)
        attn_acc[:, lo:hi] = jnp.einsum(
            "qk,kd->qd", p.astype(jnp.bfloat16), v_all[:, lo:hi],
            preferred_element_type=jnp.float32)

    y = y + jnp.dot(attn_acc[...].astype(jnp.bfloat16), pw_ref[0],
                    preferred_element_type=jnp.float32) + pb_ref[0]

    # ---- MLP branch: y += fc2(GELU(fc1(LN2(y)))) ---------------------------
    h2 = _layernorm_f32(y, ln2_g_ref[0], ln2_b_ref[0])
    h2 = jnp.dot(h2.astype(jnp.bfloat16), fc1_w_ref[0],
                 preferred_element_type=jnp.float32) + fc1_b_ref[0]
    h2 = _gelu_tanh(h2)
    y = y + jnp.dot(h2.astype(jnp.bfloat16), fc2_w_ref[0],
                    preferred_element_type=jnp.float32) + fc2_b_ref[0]

    y_vmem[...] = y

    # ---- final LayerNorm + HBM writeback after the last layer --------------
    @pl.when(d == pl.num_programs(1) - 1)
    def _finalize():
        o_ref[0] = _layernorm_f32(y, ng_ref[...], nb_ref[...])


# ----------------------------------------------------------------------------
# pallas_call wrapper
# ----------------------------------------------------------------------------
@functools.partial(jax.jit, static_argnums=(2,))
def predictor_pallas(x, params, num_heads):
    B, N, in_dim = x.shape
    depth, D, _ = params["qkv_w"].shape
    hidden = params["fc1_w"].shape[2]
    hd = D // num_heads

    kernel = functools.partial(_predictor_kernel, num_heads=num_heads,
                               head_dim=hd, model_dim=D, scale=hd ** -0.5)

    per_layer = lambda b, d: (d, 0, 0)     # stacked per-layer params
    const2 = lambda b, d: (0, 0)           # replicated 2-D params
    per_batch = lambda b, d: (b, 0, 0)     # activations

    return pl.pallas_call(
        kernel,
        grid=(B, depth),
        in_specs=[
            pl.BlockSpec((1, N, in_dim), per_batch),      # x
            pl.BlockSpec((in_dim, D), const2),            # proj weight
            pl.BlockSpec((1, 1, D), per_layer),           # ln1 gamma
            pl.BlockSpec((1, 1, D), per_layer),           # ln1 beta
            pl.BlockSpec((1, D, 3 * D), per_layer),       # qkv weight
            pl.BlockSpec((1, D, D), per_layer),           # attn out-proj weight
            pl.BlockSpec((1, 1, D), per_layer),           # attn out-proj bias
            pl.BlockSpec((1, 1, D), per_layer),           # ln2 gamma
            pl.BlockSpec((1, 1, D), per_layer),           # ln2 beta
            pl.BlockSpec((1, D, hidden), per_layer),      # fc1 weight
            pl.BlockSpec((1, 1, hidden), per_layer),      # fc1 bias
            pl.BlockSpec((1, hidden, D), per_layer),      # fc2 weight
            pl.BlockSpec((1, 1, D), per_layer),           # fc2 bias
            pl.BlockSpec((1, D), const2),                 # final norm gamma
            pl.BlockSpec((1, D), const2),                 # final norm beta
        ],
        out_specs=pl.BlockSpec((1, N, D), per_batch),
        out_shape=jax.ShapeDtypeStruct((B, N, D), jnp.float32),
        scratch_shapes=[pltpu.VMEM((N, D), jnp.float32),   # residual stream
                        pltpu.VMEM((N, D), jnp.float32)],  # attention slab
        compiler_params=pltpu.CompilerParams(
            dimension_semantics=("parallel", "arbitrary"),
            vmem_limit_bytes=_VMEM_LIMIT),
    )(x, params["proj_w"],
      params["ln1_g"], params["ln1_b"], params["qkv_w"],
      params["attn_proj_w"], params["attn_proj_b"],
      params["ln2_g"], params["ln2_b"],
      params["fc1_w"], params["fc1_b"], params["fc2_w"], params["fc2_b"],
      params["norm_g"], params["norm_b"])


# ----------------------------------------------------------------------------
# Deterministic parameter init.  torch Linear weights stored transposed
# [in, out]; per-layer params stacked along a leading depth axis so the depth
# grid axis can index them.  Matmul weights bf16 (MXU), biases / LN params f32.
# ----------------------------------------------------------------------------
def init_params(key, in_dim, out_dim, num_heads, depth, mlp_ratio):
    hidden = int(out_dim * mlp_ratio)
    ks = jax.random.split(key, 8)

    def w(k, shape, dtype=jnp.bfloat16, scale=0.02):
        return (scale * jax.random.normal(k, shape)).astype(dtype)

    return {
        "proj_w": w(ks[0], (in_dim, out_dim)),
        "ln1_g": jnp.ones((depth, 1, out_dim), jnp.float32),
        "ln1_b": jnp.zeros((depth, 1, out_dim), jnp.float32),
        "qkv_w": w(ks[1], (depth, out_dim, 3 * out_dim)),
        "attn_proj_w": w(ks[2], (depth, out_dim, out_dim)),
        "attn_proj_b": w(ks[3], (depth, 1, out_dim), jnp.float32),
        "ln2_g": jnp.ones((depth, 1, out_dim), jnp.float32),
        "ln2_b": jnp.zeros((depth, 1, out_dim), jnp.float32),
        "fc1_w": w(ks[4], (depth, out_dim, hidden)),
        "fc1_b": w(ks[5], (depth, 1, hidden), jnp.float32),
        "fc2_w": w(ks[6], (depth, hidden, out_dim)),
        "fc2_b": w(ks[7], (depth, 1, out_dim), jnp.float32),
        "norm_g": jnp.ones((1, out_dim), jnp.float32),
        "norm_b": jnp.zeros((1, out_dim), jnp.float32),
    }


# ----------------------------------------------------------------------------
# Pure-JAX f32 reference (matches the torch module: exact softmax, erf GELU)
# ----------------------------------------------------------------------------
def predictor_ref(x, params, num_heads):
    P = jax.lax.Precision.HIGHEST
    f32 = lambda a: a.astype(jnp.float32)

    def ln(t, g, b, eps=_LN_EPS):
        mu = t.mean(-1, keepdims=True)
        var = ((t - mu) ** 2).mean(-1, keepdims=True)
        return (t - mu) / jnp.sqrt(var + eps) * g + b

    B, N, _ = x.shape
    depth, D, _ = params["qkv_w"].shape
    hd = D // num_heads
    y = jnp.einsum("bnd,de->bne", x, f32(params["proj_w"]), precision=P)
    for i in range(depth):
        h = ln(y, params["ln1_g"][i, 0], params["ln1_b"][i, 0])
        qkv = jnp.einsum("bnd,de->bne", h, f32(params["qkv_w"][i]), precision=P)
        qkv = qkv.reshape(B, N, 3, num_heads, hd).transpose(2, 0, 3, 1, 4)
        q, k, v = qkv[0], qkv[1], qkv[2]                    # [B, H, N, hd]
        s = jnp.einsum("bhqd,bhkd->bhqk", q, k, precision=P) * (hd ** -0.5)
        p = jax.nn.softmax(s, axis=-1)
        o = jnp.einsum("bhqk,bhkd->bhqd", p, v, precision=P)
        o = o.transpose(0, 2, 1, 3).reshape(B, N, D)
        y = y + jnp.einsum("bnd,de->bne", o, f32(params["attn_proj_w"][i]),
                           precision=P) + params["attn_proj_b"][i, 0]
        h = ln(y, params["ln2_g"][i, 0], params["ln2_b"][i, 0])
        h = jnp.einsum("bnd,de->bne", h, f32(params["fc1_w"][i]),
                       precision=P) + params["fc1_b"][i, 0]
        h = jax.nn.gelu(h, approximate=False)
        y = y + jnp.einsum("bne,ed->bnd", h, f32(params["fc2_w"][i]),
                           precision=P) + params["fc2_b"][i, 0]
    return ln(y, params["norm_g"][0], params["norm_b"][0])


if __name__ == "__main__":
    in_dim, out_dim, num_heads, depth, mlp_ratio = 16, 32, 4, 2, 4.0
    B, N = 2, 8

    key = jax.random.PRNGKey(0)
    kx, kp = jax.random.split(key)
    x = jax.random.normal(kx, (B, N, in_dim), dtype=jnp.float32)
    params = init_params(kp, in_dim, out_dim, num_heads, depth, mlp_ratio)

    out = predictor_pallas(x, params, num_heads)
    out = jax.block_until_ready(out)

    assert out.shape == (B, N, out_dim), out.shape
    ref = predictor_ref(x, params, num_heads)
    max_err = float(jnp.max(jnp.abs(out - ref)))
    if (not bool(jnp.isfinite(out).all())) or max_err > 5e-2:
        raise SystemExit(f"mismatch vs reference: max_err={max_err}")

    print("KERNEL_OK")
</pallas_src>

<mosaic_0001>
module attributes {stable_mosaic.version = 11 : i64} {
  func.func @_predictor_kernel(%arg0: i32, %arg1: i32, %arg2: memref<1x8x16xf32, #tpu.memory_space<vmem>>, %arg3: memref<16x32xbf16, #tpu.memory_space<vmem>>, %arg4: memref<1x1x32xf32, #tpu.memory_space<vmem>>, %arg5: memref<1x1x32xf32, #tpu.memory_space<vmem>>, %arg6: memref<1x32x96xbf16, #tpu.memory_space<vmem>>, %arg7: memref<1x32x32xbf16, #tpu.memory_space<vmem>>, %arg8: memref<1x1x32xf32, #tpu.memory_space<vmem>>, %arg9: memref<1x1x32xf32, #tpu.memory_space<vmem>>, %arg10: memref<1x1x32xf32, #tpu.memory_space<vmem>>, %arg11: memref<1x32x128xbf16, #tpu.memory_space<vmem>>, %arg12: memref<1x1x128xf32, #tpu.memory_space<vmem>>, %arg13: memref<1x128x32xbf16, #tpu.memory_space<vmem>>, %arg14: memref<1x1x32xf32, #tpu.memory_space<vmem>>, %arg15: memref<1x32xf32, #tpu.memory_space<vmem>>, %arg16: memref<1x32xf32, #tpu.memory_space<vmem>>, %arg17: memref<1x8x32xf32, #tpu.memory_space<vmem>>, %arg18: memref<8x32xf32, #tpu.memory_space<vmem>>, %arg19: memref<8x32xf32, #tpu.memory_space<vmem>>) attributes {dimension_semantics = [#tpu.dimension_semantics<parallel>, #tpu.dimension_semantics<arbitrary>], iteration_bounds = array<i64: 2, 2>, scalar_prefetch = 0 : i64, scratch_operands = 2 : i64, tpu.core_type = #tpu.core_type<tc>, window_params = [{transform_indices = @transform_0, window_bounds = array<i64: 1, 8, 16>}, {pipeline_mode = #tpu.pipeline_mode<synchronous>, transform_indices = @transform_1, window_bounds = array<i64: 16, 32>}, {transform_indices = @transform_2, window_bounds = array<i64: 1, 1, 32>}, {transform_indices = @transform_3, window_bounds = array<i64: 1, 1, 32>}, {transform_indices = @transform_4, window_bounds = array<i64: 1, 32, 96>}, {transform_indices = @transform_5, window_bounds = array<i64: 1, 32, 32>}, {transform_indices = @transform_6, window_bounds = array<i64: 1, 1, 32>}, {transform_indices = @transform_7, window_bounds = array<i64: 1, 1, 32>}, {transform_indices = @transform_8, window_bounds = array<i64: 1, 1, 32>}, {transform_indices = @transform_9, window_bounds = array<i64: 1, 32, 128>}, {transform_indices = @transform_10, window_bounds = array<i64: 1, 1, 128>}, {transform_indices = @transform_11, window_bounds = array<i64: 1, 128, 32>}, {transform_indices = @transform_12, window_bounds = array<i64: 1, 1, 32>}, {pipeline_mode = #tpu.pipeline_mode<synchronous>, transform_indices = @transform_13, window_bounds = array<i64: 1, 32>}, {pipeline_mode = #tpu.pipeline_mode<synchronous>, transform_indices = @transform_14, window_bounds = array<i64: 1, 32>}, {transform_indices = @transform_15, window_bounds = array<i64: 1, 8, 32>}]} {
    %c0_i32 = arith.constant 0 : i32
    %0 = arith.cmpi eq, %arg1, %c0_i32 : i32
    %1 = arith.extui %0 : i1 to i32
    %c0_i32_0 = arith.constant 0 : i32
    %2 = arith.cmpi ne, %1, %c0_i32_0 : i32
    scf.if %2 {
      %c0_79 = arith.constant 0 : index
      %c0_80 = arith.constant 0 : index
      %c0_81 = arith.constant 0 : index
      %180 = vector.load %arg2[%c0_79, %c0_80, %c0_81] : memref<1x8x16xf32, #tpu.memory_space<vmem>>, vector<1x8x16xf32>
      %181 = vector.shape_cast %180 : vector<1x8x16xf32> to vector<8x16xf32>
      %182 = arith.truncf %181 : vector<8x16xf32> to vector<8x16xbf16>
      %c0_82 = arith.constant 0 : index
      %c0_83 = arith.constant 0 : index
      %183 = vector.load %arg3[%c0_82, %c0_83] : memref<16x32xbf16, #tpu.memory_space<vmem>>, vector<16x32xbf16>
      %cst_84 = arith.constant dense<0.000000e+00> : vector<8x32xf32>
      %184 = tpu.matmul %182, %183, %cst_84 {dimension_numbers = #tpu.dot_dimension_numbers<[1], [0], [0], [1], [0, 0, 1, 1], [], []>} : vector<8x16xbf16>, vector<16x32xbf16>, vector<8x32xf32> -> vector<8x32xf32>
      %c0_85 = arith.constant 0 : index
      %c0_86 = arith.constant 0 : index
      %185 = vector.load %arg18[%c0_85, %c0_86] : memref<8x32xf32, #tpu.memory_space<vmem>>, vector<8x32xf32>
      tpu.vector_store %arg18[%c0_85, %c0_86], %184 {strides = array<i32>} : memref<8x32xf32, #tpu.memory_space<vmem>>, vector<8x32xf32>,
    } else {
    }
    %c0 = arith.constant 0 : index
    %c0_1 = arith.constant 0 : index
    %3 = vector.load %arg18[%c0, %c0_1] : memref<8x32xf32, #tpu.memory_space<vmem>>, vector<8x32xf32>
    %c0_2 = arith.constant 0 : index
    %c0_3 = arith.constant 0 : index
    %c0_4 = arith.constant 0 : index
    %4 = vector.load %arg4[%c0_2, %c0_3, %c0_4] : memref<1x1x32xf32, #tpu.memory_space<vmem>>, vector<1x1x32xf32>
    %5 = vector.shape_cast %4 : vector<1x1x32xf32> to vector<1x32xf32>
    %c0_5 = arith.constant 0 : index
    %c0_6 = arith.constant 0 : index
    %c0_7 = arith.constant 0 : index
    %6 = vector.load %arg5[%c0_5, %c0_6, %c0_7] : memref<1x1x32xf32, #tpu.memory_space<vmem>>, vector<1x1x32xf32>
    %7 = vector.shape_cast %6 : vector<1x1x32xf32> to vector<1x32xf32>
    %cst = arith.constant dense<0.000000e+00> : vector<8xf32>
    %8 = vector.multi_reduction <add>, %3, %cst [1] : vector<8x32xf32> to vector<8xf32>
    %9 = vector.shape_cast %8 : vector<8xf32> to vector<8x1xf32>
    %cst_8 = arith.constant 3.200000e+01 : f32
    %10 = vector.broadcast %cst_8 : f32 to vector<8x1xf32>
    %11 = arith.divf %9, %10 : vector<8x1xf32>
    %12 = vector.broadcast %11 : vector<8x1xf32> to vector<8x32xf32>
    %13 = arith.subf %3, %12 : vector<8x32xf32>
    %14 = arith.mulf %13, %13 : vector<8x32xf32>
    %cst_9 = arith.constant dense<0.000000e+00> : vector<8xf32>
    %15 = vector.multi_reduction <add>, %14, %cst_9 [1] : vector<8x32xf32> to vector<8xf32>
    %16 = vector.shape_cast %15 : vector<8xf32> to vector<8x1xf32>
    %cst_10 = arith.constant 3.200000e+01 : f32
    %17 = vector.broadcast %cst_10 : f32 to vector<8x1xf32>
    %18 = arith.divf %16, %17 : vector<8x1xf32>
    %19 = vector.broadcast %11 : vector<8x1xf32> to vector<8x32xf32>
    %20 = arith.subf %3, %19 : vector<8x32xf32>
    %cst_11 = arith.constant 9.99999974E-6 : f32
    %21 = vector.broadcast %cst_11 : f32 to vector<8x1xf32>
    %22 = arith.addf %18, %21 : vector<8x1xf32>
    %23 = math.rsqrt %22 : vector<8x1xf32>
    %24 = vector.broadcast %23 : vector<8x1xf32> to vector<8x32xf32>
    %25 = arith.mulf %20, %24 : vector<8x32xf32>
    %26 = vector.broadcast %5 : vector<1x32xf32> to vector<8x32xf32>
    %27 = arith.mulf %25, %26 : vector<8x32xf32>
    %28 = vector.broadcast %7 : vector<1x32xf32> to vector<8x32xf32>
    %29 = arith.addf %27, %28 : vector<8x32xf32>
    %30 = arith.truncf %29 : vector<8x32xf32> to vector<8x32xbf16>
    %c0_12 = arith.constant 0 : index
    %c0_13 = arith.constant 0 : index
    %c0_14 = arith.constant 0 : index
    %31 = vector.load %arg6[%c0_12, %c0_13, %c0_14] : memref<1x32x96xbf16, #tpu.memory_space<vmem>>, vector<1x32x96xbf16>
    %32 = vector.shape_cast %31 : vector<1x32x96xbf16> to vector<32x96xbf16>
    %cst_15 = arith.constant dense<0.000000e+00> : vector<8x96xf32>
    %33 = tpu.matmul %30, %32, %cst_15 {dimension_numbers = #tpu.dot_dimension_numbers<[1], [0], [0], [1], [0, 0, 1, 1], [], []>} : vector<8x32xbf16>, vector<32x96xbf16>, vector<8x96xf32> -> vector<8x96xf32>
    %34 = vector.extract_strided_slice %33 {offsets = [0, 0], sizes = [8, 32], strides = [1, 1]} : vector<8x96xf32> to vector<8x32xf32>
    %cst_16 = arith.constant 0.353553385 : f32
    %35 = vector.broadcast %cst_16 : f32 to vector<8x32xf32>
    %36 = arith.mulf %34, %35 : vector<8x32xf32>
    %37 = arith.truncf %36 : vector<8x32xf32> to vector<8x32xbf16>
    %38 = vector.extract_strided_slice %33 {offsets = [0, 32], sizes = [8, 32], strides = [1, 1]} : vector<8x96xf32> to vector<8x32xf32>
    %39 = arith.truncf %38 : vector<8x32xf32> to vector<8x32xbf16>
    %40 = vector.extract_strided_slice %33 {offsets = [0, 64], sizes = [8, 32], strides = [1, 1]} : vector<8x96xf32> to vector<8x32xf32>
    %41 = arith.truncf %40 : vector<8x32xf32> to vector<8x32xbf16>
    %42 = vector.extract_strided_slice %37 {offsets = [0, 0], sizes = [8, 8], strides = [1, 1]} : vector<8x32xbf16> to vector<8x8xbf16>
    %43 = vector.extract_strided_slice %39 {offsets = [0, 0], sizes = [8, 8], strides = [1, 1]} : vector<8x32xbf16> to vector<8x8xbf16>
    "tpu.trace_start"() <{level = 10 : i32, message = "qd,kd->qk"}> : () -> ()
    %cst_17 = arith.constant dense<0.000000e+00> : vector<8x8xf32>
    %44 = tpu.matmul %42, %43, %cst_17 {dimension_numbers = #tpu.dot_dimension_numbers<[1], [1], [0], [0], [0, 0, 1, 0], [], []>} : vector<8x8xbf16>, vector<8x8xbf16>, vector<8x8xf32> -> vector<8x8xf32>
    "tpu.trace_stop"() : () -> ()
    %cst_18 = arith.constant dense<0xFF800000> : vector<8xf32>
    %45 = vector.multi_reduction <maximumf>, %44, %cst_18 [1] : vector<8x8xf32> to vector<8xf32>
    %46 = vector.shape_cast %45 : vector<8xf32> to vector<8x1xf32>
    %47 = vector.broadcast %46 : vector<8x1xf32> to vector<8x8xf32>
    %48 = arith.subf %44, %47 : vector<8x8xf32>
    %49 = math.exp %48 : vector<8x8xf32>
    %cst_19 = arith.constant dense<0.000000e+00> : vector<8xf32>
    %50 = vector.multi_reduction <add>, %49, %cst_19 [1] : vector<8x8xf32> to vector<8xf32>
    %51 = vector.shape_cast %50 : vector<8xf32> to vector<8x1xf32>
    %52 = tpu.reciprocal %51 {approx = true} : vector<8x1xf32> -> vector<8x1xf32>
    %53 = vector.broadcast %52 : vector<8x1xf32> to vector<8x8xf32>
    %54 = arith.mulf %49, %53 : vector<8x8xf32>
    %55 = arith.truncf %54 : vector<8x8xf32> to vector<8x8xbf16>
    %56 = vector.extract_strided_slice %41 {offsets = [0, 0], sizes = [8, 8], strides = [1, 1]} : vector<8x32xbf16> to vector<8x8xbf16>
    "tpu.trace_start"() <{level = 10 : i32, message = "qk,kd->qd"}> : () -> ()
    %cst_20 = arith.constant dense<0.000000e+00> : vector<8x8xf32>
    %57 = tpu.matmul %55, %56, %cst_20 {dimension_numbers = #tpu.dot_dimension_numbers<[1], [0], [0], [1], [0, 0, 1, 1], [], []>} : vector<8x8xbf16>, vector<8x8xbf16>, vector<8x8xf32> -> vector<8x8xf32>
    "tpu.trace_stop"() : () -> ()
    %c0_21 = arith.constant 0 : index
    %c0_22 = arith.constant 0 : index
    %58 = vector.load %arg19[%c0_21, %c0_22] : memref<8x32xf32, #tpu.memory_space<vmem>>, vector<8x8xf32>
    tpu.vector_store %arg19[%c0_21, %c0_22], %57 {strides = array<i32>} : memref<8x32xf32, #tpu.memory_space<vmem>>, vector<8x8xf32>,
    %59 = vector.extract_strided_slice %37 {offsets = [0, 8], sizes = [8, 8], strides = [1, 1]} : vector<8x32xbf16> to vector<8x8xbf16>
    %60 = vector.extract_strided_slice %39 {offsets = [0, 8], sizes = [8, 8], strides = [1, 1]} : vector<8x32xbf16> to vector<8x8xbf16>
    "tpu.trace_start"() <{level = 10 : i32, message = "qd,kd->qk"}> : () -> ()
    %cst_23 = arith.constant dense<0.000000e+00> : vector<8x8xf32>
    %61 = tpu.matmul %59, %60, %cst_23 {dimension_numbers = #tpu.dot_dimension_numbers<[1], [1], [0], [0], [0, 0, 1, 0], [], []>} : vector<8x8xbf16>, vector<8x8xbf16>, vector<8x8xf32> -> vector<8x8xf32>
    "tpu.trace_stop"() : () -> ()
    %cst_24 = arith.constant dense<0xFF800000> : vector<8xf32>
    %62 = vector.multi_reduction <maximumf>, %61, %cst_24 [1] : vector<8x8xf32> to vector<8xf32>
    %63 = vector.shape_cast %62 : vector<8xf32> to vector<8x1xf32>
    %64 = vector.broadcast %63 : vector<8x1xf32> to vector<8x8xf32>
    %65 = arith.subf %61, %64 : vector<8x8xf32>
    %66 = math.exp %65 : vector<8x8xf32>
    %cst_25 = arith.constant dense<0.000000e+00> : vector<8xf32>
    %67 = vector.multi_reduction <add>, %66, %cst_25 [1] : vector<8x8xf32> to vector<8xf32>
    %68 = vector.shape_cast %67 : vector<8xf32> to vector<8x1xf32>
    %69 = tpu.reciprocal %68 {approx = true} : vector<8x1xf32> -> vector<8x1xf32>
    %70 = vector.broadcast %69 : vector<8x1xf32> to vector<8x8xf32>
    %71 = arith.mulf %66, %70 : vector<8x8xf32>
    %72 = arith.truncf %71 : vector<8x8xf32> to vector<8x8xbf16>
    %73 = vector.extract_strided_slice %41 {offsets = [0, 8], sizes = [8, 8], strides = [1, 1]} : vector<8x32xbf16> to vector<8x8xbf16>
    "tpu.trace_start"() <{level = 10 : i32, message = "qk,kd->qd"}> : () -> ()
    %cst_26 = arith.constant dense<0.000000e+00> : vector<8x8xf32>
    %74 = tpu.matmul %72, %73, %cst_26 {dimension_numbers = #tpu.dot_dimension_numbers<[1], [0], [0], [1], [0, 0, 1, 1], [], []>} : vector<8x8xbf16>, vector<8x8xbf16>, vector<8x8xf32> -> vector<8x8xf32>
    "tpu.trace_stop"() : () -> ()
    %c0_27 = arith.constant 0 : index
    %c8 = arith.constant 8 : index
    %75 = vector.load %arg19[%c0_27, %c8] : memref<8x32xf32, #tpu.memory_space<vmem>>, vector<8x8xf32>
    tpu.vector_store %arg19[%c0_27, %c8], %74 {strides = array<i32>} : memref<8x32xf32, #tpu.memory_space<vmem>>, vector<8x8xf32>,
    %76 = vector.extract_strided_slice %37 {offsets = [0, 16], sizes = [8, 8], strides = [1, 1]} : vector<8x32xbf16> to vector<8x8xbf16>
    %77 = vector.extract_strided_slice %39 {offsets = [0, 16], sizes = [8, 8], strides = [1, 1]} : vector<8x32xbf16> to vector<8x8xbf16>
    "tpu.trace_start"() <{level = 10 : i32, message = "qd,kd->qk"}> : () -> ()
    %cst_28 = arith.constant dense<0.000000e+00> : vector<8x8xf32>
    %78 = tpu.matmul %76, %77, %cst_28 {dimension_numbers = #tpu.dot_dimension_numbers<[1], [1], [0], [0], [0, 0, 1, 0], [], []>} : vector<8x8xbf16>, vector<8x8xbf16>, vector<8x8xf32> -> vector<8x8xf32>
    "tpu.trace_stop"() : () -> ()
    %cst_29 = arith.constant dense<0xFF800000> : vector<8xf32>
    %79 = vector.multi_reduction <maximumf>, %78, %cst_29 [1] : vector<8x8xf32> to vector<8xf32>
    %80 = vector.shape_cast %79 : vector<8xf32> to vector<8x1xf32>
    %81 = vector.broadcast %80 : vector<8x1xf32> to vector<8x8xf32>
    %82 = arith.subf %78, %81 : vector<8x8xf32>
    %83 = math.exp %82 : vector<8x8xf32>
    %cst_30 = arith.constant dense<0.000000e+00> : vector<8xf32>
    %84 = vector.multi_reduction <add>, %83, %cst_30 [1] : vector<8x8xf32> to vector<8xf32>
    %85 = vector.shape_cast %84 : vector<8xf32> to vector<8x1xf32>
    %86 = tpu.reciprocal %85 {approx = true} : vector<8x1xf32> -> vector<8x1xf32>
    %87 = vector.broadcast %86 : vector<8x1xf32> to vector<8x8xf32>
    %88 = arith.mulf %83, %87 : vector<8x8xf32>
    %89 = arith.truncf %88 : vector<8x8xf32> to vector<8x8xbf16>
    %90 = vector.extract_strided_slice %41 {offsets = [0, 16], sizes = [8, 8], strides = [1, 1]} : vector<8x32xbf16> to vector<8x8xbf16>
    "tpu.trace_start"() <{level = 10 : i32, message = "qk,kd->qd"}> : () -> ()
    %cst_31 = arith.constant dense<0.000000e+00> : vector<8x8xf32>
    %91 = tpu.matmul %89, %90, %cst_31 {dimension_numbers = #tpu.dot_dimension_numbers<[1], [0], [0], [1], [0, 0, 1, 1], [], []>} : vector<8x8xbf16>, vector<8x8xbf16>, vector<8x8xf32> -> vector<8x8xf32>
    "tpu.trace_stop"() : () -> ()
    %c0_32 = arith.constant 0 : index
    %c16 = arith.constant 16 : index
    %92 = vector.load %arg19[%c0_32, %c16] : memref<8x32xf32, #tpu.memory_space<vmem>>, vector<8x8xf32>
    tpu.vector_store %arg19[%c0_32, %c16], %91 {strides = array<i32>} : memref<8x32xf32, #tpu.memory_space<vmem>>, vector<8x8xf32>,
    %93 = vector.extract_strided_slice %37 {offsets = [0, 24], sizes = [8, 8], strides = [1, 1]} : vector<8x32xbf16> to vector<8x8xbf16>
    %94 = vector.extract_strided_slice %39 {offsets = [0, 24], sizes = [8, 8], strides = [1, 1]} : vector<8x32xbf16> to vector<8x8xbf16>
    "tpu.trace_start"() <{level = 10 : i32, message = "qd,kd->qk"}> : () -> ()
    %cst_33 = arith.constant dense<0.000000e+00> : vector<8x8xf32>
    %95 = tpu.matmul %93, %94, %cst_33 {dimension_numbers = #tpu.dot_dimension_numbers<[1], [1], [0], [0], [0, 0, 1, 0], [], []>} : vector<8x8xbf16>, vector<8x8xbf16>, vector<8x8xf32> -> vector<8x8xf32>
    "tpu.trace_stop"() : () -> ()
    %cst_34 = arith.constant dense<0xFF800000> : vector<8xf32>
    %96 = vector.multi_reduction <maximumf>, %95, %cst_34 [1] : vector<8x8xf32> to vector<8xf32>
    %97 = vector.shape_cast %96 : vector<8xf32> to vector<8x1xf32>
    %98 = vector.broadcast %97 : vector<8x1xf32> to vector<8x8xf32>
    %99 = arith.subf %95, %98 : vector<8x8xf32>
    %100 = math.exp %99 : vector<8x8xf32>
    %cst_35 = arith.constant dense<0.000000e+00> : vector<8xf32>
    %101 = vector.multi_reduction <add>, %100, %cst_35 [1] : vector<8x8xf32> to vector<8xf32>
    %102 = vector.shape_cast %101 : vector<8xf32> to vector<8x1xf32>
    %103 = tpu.reciprocal %102 {approx = true} : vector<8x1xf32> -> vector<8x1xf32>
    %104 = vector.broadcast %103 : vector<8x1xf32> to vector<8x8xf32>
    %105 = arith.mulf %100, %104 : vector<8x8xf32>
    %106 = arith.truncf %105 : vector<8x8xf32> to vector<8x8xbf16>
    %107 = vector.extract_strided_slice %41 {offsets = [0, 24], sizes = [8, 8], strides = [1, 1]} : vector<8x32xbf16> to vector<8x8xbf16>
    "tpu.trace_start"() <{level = 10 : i32, message = "qk,kd->qd"}> : () -> ()
    %cst_36 = arith.constant dense<0.000000e+00> : vector<8x8xf32>
    %108 = tpu.matmul %106, %107, %cst_36 {dimension_numbers = #tpu.dot_dimension_numbers<[1], [0], [0], [1], [0, 0, 1, 1], [], []>} : vector<8x8xbf16>, vector<8x8xbf16>, vector<8x8xf32> -> vector<8x8xf32>
    "tpu.trace_stop"() : () -> ()
    %c0_37 = arith.constant 0 : index
    %c24 = arith.constant 24 : index
    %109 = vector.load %arg19[%c0_37, %c24] : memref<8x32xf32, #tpu.memory_space<vmem>>, vector<8x8xf32>
    tpu.vector_store %arg19[%c0_37, %c24], %108 {strides = array<i32>} : memref<8x32xf32, #tpu.memory_space<vmem>>, vector<8x8xf32>,
    %c0_38 = arith.constant 0 : index
    %c0_39 = arith.constant 0 : index
    %110 = vector.load %arg19[%c0_38, %c0_39] : memref<8x32xf32, #tpu.memory_space<vmem>>, vector<8x32xf32>
    %111 = arith.truncf %110 : vector<8x32xf32> to vector<8x32xbf16>
    %c0_40 = arith.constant 0 : index
    %c0_41 = arith.constant 0 : index
    %c0_42 = arith.constant 0 : index
    %112 = vector.load %arg7[%c0_40, %c0_41, %c0_42] : memref<1x32x32xbf16, #tpu.memory_space<vmem>>, vector<1x32x32xbf16>
    %113 = vector.shape_cast %112 : vector<1x32x32xbf16> to vector<32x32xbf16>
    %cst_43 = arith.constant dense<0.000000e+00> : vector<8x32xf32>
    %114 = tpu.matmul %111, %113, %cst_43 {dimension_numbers = #tpu.dot_dimension_numbers<[1], [0], [0], [1], [0, 0, 1, 1], [], []>} : vector<8x32xbf16>, vector<32x32xbf16>, vector<8x32xf32> -> vector<8x32xf32>
    %115 = arith.addf %3, %114 : vector<8x32xf32>
    %c0_44 = arith.constant 0 : index
    %c0_45 = arith.constant 0 : index
    %c0_46 = arith.constant 0 : index
    %116 = vector.load %arg8[%c0_44, %c0_45, %c0_46] : memref<1x1x32xf32, #tpu.memory_space<vmem>>, vector<1x1x32xf32>
    %117 = vector.shape_cast %116 : vector<1x1x32xf32> to vector<1x32xf32>
    %118 = vector.broadcast %117 : vector<1x32xf32> to vector<8x32xf32>
    %119 = arith.addf %115, %118 : vector<8x32xf32>
    %c0_47 = arith.constant 0 : index
    %c0_48 = arith.constant 0 : index
    %c0_49 = arith.constant 0 : index
    %120 = vector.load %arg9[%c0_47, %c0_48, %c0_49] : memref<1x1x32xf32, #tpu.memory_space<vmem>>, vector<1x1x32xf32>
    %121 = vector.shape_cast %120 : vector<1x1x32xf32> to vector<1x32xf32>
    %c0_50 = arith.constant 0 : index
    %c0_51 = arith.constant 0 : index
    %c0_52 = arith.constant 0 : index
    %122 = vector.load %arg10[%c0_50, %c0_51, %c0_52] : memref<1x1x32xf32, #tpu.memory_space<vmem>>, vector<1x1x32xf32>
    %123 = vector.shape_cast %122 : vector<1x1x32xf32> to vector<1x32xf32>
    %cst_53 = arith.constant dense<0.000000e+00> : vector<8xf32>
    %124 = vector.multi_reduction <add>, %119, %cst_53 [1] : vector<8x32xf32> to vector<8xf32>
    %125 = vector.shape_cast %124 : vector<8xf32> to vector<8x1xf32>
    %cst_54 = arith.constant 3.200000e+01 : f32
    %126 = vector.broadcast %cst_54 : f32 to vector<8x1xf32>
    %127 = arith.divf %125, %126 : vector<8x1xf32>
    %128 = vector.broadcast %127 : vector<8x1xf32> to vector<8x32xf32>
    %129 = arith.subf %119, %128 : vector<8x32xf32>
    %130 = arith.mulf %129, %129 : vector<8x32xf32>
    %cst_55 = arith.constant dense<0.000000e+00> : vector<8xf32>
    %131 = vector.multi_reduction <add>, %130, %cst_55 [1] : vector<8x32xf32> to vector<8xf32>
    %132 = vector.shape_cast %131 : vector<8xf32> to vector<8x1xf32>
    %cst_56 = arith.constant 3.200000e+01 : f32
    %133 = vector.broadcast %cst_56 : f32 to vector<8x1xf32>
    %134 = arith.divf %132, %133 : vector<8x1xf32>
    %135 = vector.broadcast %127 : vector<8x1xf32> to vector<8x32xf32>
    %136 = arith.subf %119, %135 : vector<8x32xf32>
    %cst_57 = arith.constant 9.99999974E-6 : f32
    %137 = vector.broadcast %cst_57 : f32 to vector<8x1xf32>
    %138 = arith.addf %134, %137 : vector<8x1xf32>
    %139 = math.rsqrt %138 : vector<8x1xf32>
    %140 = vector.broadcast %139 : vector<8x1xf32> to vector<8x32xf32>
    %141 = arith.mulf %136, %140 : vector<8x32xf32>
    %142 = vector.broadcast %121 : vector<1x32xf32> to vector<8x32xf32>
    %143 = arith.mulf %141, %142 : vector<8x32xf32>
    %144 = vector.broadcast %123 : vector<1x32xf32> to vector<8x32xf32>
    %145 = arith.addf %143, %144 : vector<8x32xf32>
    %146 = arith.truncf %145 : vector<8x32xf32> to vector<8x32xbf16>
    %c0_58 = arith.constant 0 : index
    %c0_59 = arith.constant 0 : index
    %c0_60 = arith.constant 0 : index
    %147 = vector.load %arg11[%c0_58, %c0_59, %c0_60] : memref<1x32x128xbf16, #tpu.memory_space<vmem>>, vector<1x32x128xbf16>
    %148 = vector.shape_cast %147 : vector<1x32x128xbf16> to vector<32x128xbf16>
    %cst_61 = arith.constant dense<0.000000e+00> : vector<8x128xf32>
    %149 = tpu.matmul %146, %148, %cst_61 {dimension_numbers = #tpu.dot_dimension_numbers<[1], [0], [0], [1], [0, 0, 1, 1], [], []>} : vector<8x32xbf16>, vector<32x128xbf16>, vector<8x128xf32> -> vector<8x128xf32>
    %c0_62 = arith.constant 0 : index
    %c0_63 = arith.constant 0 : index
    %c0_64 = arith.constant 0 : index
    %150 = vector.load %arg12[%c0_62, %c0_63, %c0_64] : memref<1x1x128xf32, #tpu.memory_space<vmem>>, vector<1x1x128xf32>
    %151 = vector.shape_cast %150 : vector<1x1x128xf32> to vector<1x128xf32>
    %152 = vector.broadcast %151 : vector<1x128xf32> to vector<8x128xf32>
    %153 = arith.addf %149, %152 : vector<8x128xf32>
    %cst_65 = arith.constant 5.000000e-01 : f32
    %154 = vector.broadcast %cst_65 : f32 to vector<8x128xf32>
    %155 = arith.mulf %154, %153 : vector<8x128xf32>
    %cst_66 = arith.constant 4.471500e-02 : f32
    %156 = vector.broadcast %cst_66 : f32 to vector<8x128xf32>
    %157 = arith.mulf %156, %153 : vector<8x128xf32>
    %158 = arith.mulf %157, %153 : vector<8x128xf32>
    %159 = arith.mulf %158, %153 : vector<8x128xf32>
    %160 = arith.addf %153, %159 : vector<8x128xf32>
    %cst_67 = arith.constant 0.797884583 : f32
    %161 = vector.broadcast %cst_67 : f32 to vector<8x128xf32>
    %162 = arith.mulf %161, %160 : vector<8x128xf32>
    %163 = math.tanh %162 : vector<8x128xf32>
    %cst_68 = arith.constant 1.000000e+00 : f32
    %164 = vector.broadcast %cst_68 : f32 to vector<8x128xf32>
    %165 = arith.addf %164, %163 : vector<8x128xf32>
    %166 = arith.mulf %155, %165 : vector<8x128xf32>
    %167 = arith.truncf %166 : vector<8x128xf32> to vector<8x128xbf16>
    %c0_69 = arith.constant 0 : index
    %c0_70 = arith.constant 0 : index
    %c0_71 = arith.constant 0 : index
    %168 = vector.load %arg13[%c0_69, %c0_70, %c0_71] : memref<1x128x32xbf16, #tpu.memory_space<vmem>>, vector<1x128x32xbf16>
    %169 = vector.shape_cast %168 : vector<1x128x32xbf16> to vector<128x32xbf16>
    %cst_72 = arith.constant dense<0.000000e+00> : vector<8x32xf32>
    %170 = tpu.matmul %167, %169, %cst_72 {dimension_numbers = #tpu.dot_dimension_numbers<[1], [0], [0], [1], [0, 0, 1, 1], [], []>} : vector<8x128xbf16>, vector<128x32xbf16>, vector<8x32xf32> -> vector<8x32xf32>
    %171 = arith.addf %119, %170 : vector<8x32xf32>
    %c0_73 = arith.constant 0 : index
    %c0_74 = arith.constant 0 : index
    %c0_75 = arith.constant 0 : index
    %172 = vector.load %arg14[%c0_73, %c0_74, %c0_75] : memref<1x1x32xf32, #tpu.memory_space<vmem>>, vector<1x1x32xf32>
    %173 = vector.shape_cast %172 : vector<1x1x32xf32> to vector<1x32xf32>
    %174 = vector.broadcast %173 : vector<1x32xf32> to vector<8x32xf32>
    %175 = arith.addf %171, %174 : vector<8x32xf32>
    %c0_76 = arith.constant 0 : index
    %c0_77 = arith.constant 0 : index
    %176 = vector.load %arg18[%c0_76, %c0_77] : memref<8x32xf32, #tpu.memory_space<vmem>>, vector<8x32xf32>
    tpu.vector_store %arg18[%c0_76, %c0_77], %175 {strides = array<i32>} : memref<8x32xf32, #tpu.memory_space<vmem>>, vector<8x32xf32>,
    %c1_i32 = arith.constant 1 : i32
    %177 = arith.cmpi eq, %arg1, %c1_i32 : i32
    %178 = arith.extui %177 : i1 to i32
    %c0_i32_78 = arith.constant 0 : i32
    %179 = arith.cmpi ne, %178, %c0_i32_78 : i32
    scf.if %179 {
      %c0_79 = arith.constant 0 : index
      %c0_80 = arith.constant 0 : index
      %180 = vector.load %arg15[%c0_79, %c0_80] : memref<1x32xf32, #tpu.memory_space<vmem>>, vector<1x32xf32>
      %c0_81 = arith.constant 0 : index
      %c0_82 = arith.constant 0 : index
      %181 = vector.load %arg16[%c0_81, %c0_82] : memref<1x32xf32, #tpu.memory_space<vmem>>, vector<1x32xf32>
      %cst_83 = arith.constant dense<0.000000e+00> : vector<8xf32>
      %182 = vector.multi_reduction <add>, %175, %cst_83 [1] : vector<8x32xf32> to vector<8xf32>
      %183 = vector.shape_cast %182 : vector<8xf32> to vector<8x1xf32>
      %cst_84 = arith.constant 3.200000e+01 : f32
      %184 = vector.broadcast %cst_84 : f32 to vector<8x1xf32>
      %185 = arith.divf %183, %184 : vector<8x1xf32>
      %186 = vector.broadcast %185 : vector<8x1xf32> to vector<8x32xf32>
      %187 = arith.subf %175, %186 : vector<8x32xf32>
      %188 = arith.mulf %187, %187 : vector<8x32xf32>
      %cst_85 = arith.constant dense<0.000000e+00> : vector<8xf32>
      %189 = vector.multi_reduction <add>, %188, %cst_85 [1] : vector<8x32xf32> to vector<8xf32>
      %190 = vector.shape_cast %189 : vector<8xf32> to vector<8x1xf32>
      %cst_86 = arith.constant 3.200000e+01 : f32
      %191 = vector.broadcast %cst_86 : f32 to vector<8x1xf32>
      %192 = arith.divf %190, %191 : vector<8x1xf32>
      %193 = vector.broadcast %185 : vector<8x1xf32> to vector<8x32xf32>
      %194 = arith.subf %175, %193 : vector<8x32xf32>
      %cst_87 = arith.constant 9.99999974E-6 : f32
      %195 = vector.broadcast %cst_87 : f32 to vector<8x1xf32>
      %196 = arith.addf %192, %195 : vector<8x1xf32>
      %197 = math.rsqrt %196 : vector<8x1xf32>
      %198 = vector.broadcast %197 : vector<8x1xf32> to vector<8x32xf32>
      %199 = arith.mulf %194, %198 : vector<8x32xf32>
      %200 = vector.broadcast %180 : vector<1x32xf32> to vector<8x32xf32>
      %201 = arith.mulf %199, %200 : vector<8x32xf32>
      %202 = vector.broadcast %181 : vector<1x32xf32> to vector<8x32xf32>
      %203 = arith.addf %201, %202 : vector<8x32xf32>
      %c0_88 = arith.constant 0 : index
      %c0_89 = arith.constant 0 : index
      %c0_90 = arith.constant 0 : index
      %204 = vector.load %arg17[%c0_88, %c0_89, %c0_90] : memref<1x8x32xf32, #tpu.memory_space<vmem>>, vector<1x8x32xf32>
      %205 = vector.shape_cast %204 : vector<1x8x32xf32> to vector<8x32xf32>
      %206 = vector.shape_cast %203 : vector<8x32xf32> to vector<1x8x32xf32>
      tpu.vector_store %arg17[%c0_88, %c0_89, %c0_90], %206 {strides = array<i32>} : memref<1x8x32xf32, #tpu.memory_space<vmem>>, vector<1x8x32xf32>,
    } else {
    }
    return
  }
  func.func @transform_0(%arg0: i32, %arg1: i32) -> (i32, i32, i32) {
    %c0_i32 = arith.constant 0 : i32
    %c0_i32_0 = arith.constant 0 : i32
    %c0_i32_1 = arith.constant 0 : i32
    return %arg0, %c0_i32, %c0_i32_0 : i32, i32, i32
  }
  func.func @transform_1(%arg0: i32, %arg1: i32) -> (i32, i32) {
    %c0_i32 = arith.constant 0 : i32
    %c0_i32_0 = arith.constant 0 : i32
    %c0_i32_1 = arith.constant 0 : i32
    return %c0_i32, %c0_i32_0 : i32, i32
  }
  func.func @transform_2(%arg0: i32, %arg1: i32) -> (i32, i32, i32) {
    %c0_i32 = arith.constant 0 : i32
    %c0_i32_0 = arith.constant 0 : i32
    %c0_i32_1 = arith.constant 0 : i32
    return %arg1, %c0_i32, %c0_i32_0 : i32, i32, i32
  }
  func.func @transform_3(%arg0: i32, %arg1: i32) -> (i32, i32, i32) {
    %c0_i32 = arith.constant 0 : i32
    %c0_i32_0 = arith.constant 0 : i32
    %c0_i32_1 = arith.constant 0 : i32
    return %arg1, %c0_i32, %c0_i32_0 : i32, i32, i32
  }
  func.func @transform_4(%arg0: i32, %arg1: i32) -> (i32, i32, i32) {
    %c0_i32 = arith.constant 0 : i32
    %c0_i32_0 = arith.constant 0 : i32
    %c0_i32_1 = arith.constant 0 : i32
    return %arg1, %c0_i32, %c0_i32_0 : i32, i32, i32
  }
  func.func @transform_5(%arg0: i32, %arg1: i32) -> (i32, i32, i32) {
    %c0_i32 = arith.constant 0 : i32
    %c0_i32_0 = arith.constant 0 : i32
    %c0_i32_1 = arith.constant 0 : i32
    return %arg1, %c0_i32, %c0_i32_0 : i32, i32, i32
  }
  func.func @transform_6(%arg0: i32, %arg1: i32) -> (i32, i32, i32) {
    %c0_i32 = arith.constant 0 : i32
    %c0_i32_0 = arith.constant 0 : i32
    %c0_i32_1 = arith.constant 0 : i32
    return %arg1, %c0_i32, %c0_i32_0 : i32, i32, i32
  }
  func.func @transform_7(%arg0: i32, %arg1: i32) -> (i32, i32, i32) {
    %c0_i32 = arith.constant 0 : i32
    %c0_i32_0 = arith.constant 0 : i32
    %c0_i32_1 = arith.constant 0 : i32
    return %arg1, %c0_i32, %c0_i32_0 : i32, i32, i32
  }
  func.func @transform_8(%arg0: i32, %arg1: i32) -> (i32, i32, i32) {
    %c0_i32 = arith.constant 0 : i32
    %c0_i32_0 = arith.constant 0 : i32
    %c0_i32_1 = arith.constant 0 : i32
    return %arg1, %c0_i32, %c0_i32_0 : i32, i32, i32
  }
  func.func @transform_9(%arg0: i32, %arg1: i32) -> (i32, i32, i32) {
    %c0_i32 = arith.constant 0 : i32
    %c0_i32_0 = arith.constant 0 : i32
    %c0_i32_1 = arith.constant 0 : i32
    return %arg1, %c0_i32, %c0_i32_0 : i32, i32, i32
  }
  func.func @transform_10(%arg0: i32, %arg1: i32) -> (i32, i32, i32) {
    %c0_i32 = arith.constant 0 : i32
    %c0_i32_0 = arith.constant 0 : i32
    %c0_i32_1 = arith.constant 0 : i32
    return %arg1, %c0_i32, %c0_i32_0 : i32, i32, i32
  }
  func.func @transform_11(%arg0: i32, %arg1: i32) -> (i32, i32, i32) {
    %c0_i32 = arith.constant 0 : i32
    %c0_i32_0 = arith.constant 0 : i32
    %c0_i32_1 = arith.constant 0 : i32
    return %arg1, %c0_i32, %c0_i32_0 : i32, i32, i32
  }
  func.func @transform_12(%arg0: i32, %arg1: i32) -> (i32, i32, i32) {
    %c0_i32 = arith.constant 0 : i32
    %c0_i32_0 = arith.constant 0 : i32
    %c0_i32_1 = arith.constant 0 : i32
    return %arg1, %c0_i32, %c0_i32_0 : i32, i32, i32
  }
  func.func @transform_13(%arg0: i32, %arg1: i32) -> (i32, i32) {
    %c0_i32 = arith.constant 0 : i32
    %c0_i32_0 = arith.constant 0 : i32
    %c0_i32_1 = arith.constant 0 : i32
    return %c0_i32, %c0_i32_0 : i32, i32
  }
  func.func @transform_14(%arg0: i32, %arg1: i32) -> (i32, i32) {
    %c0_i32 = arith.constant 0 : i32
    %c0_i32_0 = arith.constant 0 : i32
    %c0_i32_1 = arith.constant 0 : i32
    return %c0_i32, %c0_i32_0 : i32, i32
  }
  func.func @transform_15(%arg0: i32, %arg1: i32) -> (i32, i32, i32) {
    %c0_i32 = arith.constant 0 : i32
    %c0_i32_0 = arith.constant 0 : i32
    %c0_i32_1 = arith.constant 0 : i32
    return %arg0, %c0_i32, %c0_i32_0 : i32, i32, i32
  }
}

</mosaic_0001>

<llo_original>
// kernel: predictor_pallas.1
$region0: #{predictor_pallas.1}
  #allocation0 [shape = 'u32[]', space=smem, size = 0x4, offset = 0x4, fixed_abs, tag = 'smem constant byte address 0x4 - core index']
  #allocation1 [shape = 'u32[144,128]{1,0:T(1,128)}', space=vmem, size = 0x12000, scoped, tag = 'internal scratch']
  #allocation2 [shape = 'f32[8,32]{1,0:T(8,128)}', space=vmem, size = 0x1000, scoped, tag = 'scratch operand']
  #allocation3 [shape = 'f32[8,32]{1,0:T(8,128)}', space=vmem, size = 0x1000, scoped, tag = 'scratch operand']
  %s0 = inlined_call_operand.vmem [shape: f32[2,8,16], index: 0, kind: input, shape index: {}]
  %s1 = inlined_call_operand.vmem [shape: bf16[16,32], index: 1, kind: input, shape index: {}]
  %s2 = inlined_call_operand.vmem [shape: f32[2,1,32], index: 2, kind: input, shape index: {}]
  %s3 = inlined_call_operand.vmem [shape: f32[2,1,32], index: 3, kind: input, shape index: {}]
  %s4 = inlined_call_operand.vmem [shape: bf16[2,32,96], index: 4, kind: input, shape index: {}]
  %s5 = inlined_call_operand.vmem [shape: bf16[2,32,32], index: 5, kind: input, shape index: {}]
  %s6 = inlined_call_operand.vmem [shape: f32[2,1,32], index: 6, kind: input, shape index: {}]
  %s7 = inlined_call_operand.vmem [shape: f32[2,1,32], index: 7, kind: input, shape index: {}]
  %s8 = inlined_call_operand.vmem [shape: f32[2,1,32], index: 8, kind: input, shape index: {}]
  %s9 = inlined_call_operand.vmem [shape: bf16[2,32,128], index: 9, kind: input, shape index: {}]
  %s10 = inlined_call_operand.vmem [shape: f32[2,1,128], index: 10, kind: input, shape index: {}]
  %s11 = inlined_call_operand.vmem [shape: bf16[2,128,32], index: 11, kind: input, shape index: {}]
  %s12 = inlined_call_operand.vmem [shape: f32[2,1,32], index: 12, kind: input, shape index: {}]
  %s13 = inlined_call_operand.vmem [shape: f32[1,32], index: 13, kind: input, shape index: {}]
  %s14 = inlined_call_operand.vmem [shape: f32[1,32], index: 14, kind: input, shape index: {}]
  %s15 = inlined_call_operand.hbm [shape: f32[2,8,32], index: 15, kind: output, shape index: {}]
  %s16 = sld [smem:[#allocation0]]
  $region101: #{predictor_pallas.1} parent=0
    _
  %s18 = ssub.s32 1, %s16
  %s19 = scalar_select 0, %s18, %s16
  $region1: #{predictor_pallas.1} parent=0
    #allocation4 [shape = 'u8[8192]{0}', space=vmem, size = 0x2000, scoped, tag = 'output window, operand 0']
    #allocation5 [shape = 's32[2]{0}', space=sflag, size = 0x8, scoped, tag = 'scoped memory for predictor_pallas.1']
    %20 = vsyncpa [#allocation5], 0
    %s21 = scalar_lea.sflag [#allocation5], 1
    %22 = vsyncpa %s21, 0
    loop: start=0, step=1, limit=6
    $region2: #{predictor_pallas.1} parent=1 // loop_pre_header
      _
    $region3: #{predictor_pallas.1} parent=1 // loop_header
      %s24 = sphi 0, %s28
      %p25 = scmp.ge.s32.totalorder %s24, 6
      %s31 = sphi 0, %s43
      %s32 = sphi 0, %s39
      %s33 = sphi 0, %s31
      %s34 = sphi 0, %s32
      %s35 = sphi 0, %s33
      %s36 = sphi 0, %s34
      %s46 = sphi 0, %s48
      %s49 = sphi 0, %s46
      %s50 = sphi 0, %s49
      %s66 = sphi 0, %s50
      %s70 = sphi 0, %s70
      %s72 = sphi 0, %s70
      %s73 = sphi 0, %s72
      %s87 = sphi 0, %s73
      %s93 = sphi 0, %s95
      %s96 = sphi 0, %s93
      %s97 = sphi 0, %s96
      %s113 = sphi 0, %s97
      %s119 = sphi 0, %s121
      %s122 = sphi 0, %s119
      %s123 = sphi 0, %s122
      %s139 = sphi 0, %s123
      %s145 = sphi 0, %s147
      %s148 = sphi 0, %s145
      %s149 = sphi 0, %s148
      %s165 = sphi 0, %s149
      %s171 = sphi 0, %s173
      %s174 = sphi 0, %s171
      %s175 = sphi 0, %s174
      %s191 = sphi 0, %s175
      %s197 = sphi 0, %s199
      %s200 = sphi 0, %s197
      %s201 = sphi 0, %s200
      %s217 = sphi 0, %s201
      %s223 = sphi 0, %s225
      %s226 = sphi 0, %s223
      %s227 = sphi 0, %s226
      %s243 = sphi 0, %s227
      %s249 = sphi 0, %s251
      %s252 = sphi 0, %s249
      %s253 = sphi 0, %s252
      %s269 = sphi 0, %s253
      %s275 = sphi 0, %s277
      %s278 = sphi 0, %s275
      %s279 = sphi 0, %s278
      %s295 = sphi 0, %s279
      %s301 = sphi 0, %s303
      %s304 = sphi 0, %s301
      %s305 = sphi 0, %s304
      %s321 = sphi 0, %s305
      %s327 = sphi 0, %s329
      %s330 = sphi 0, %s327
      %s331 = sphi 0, %s330
      %s347 = sphi 0, %s331
      %s353 = sphi 0, %s355
      %s356 = sphi 0, %s353
      %s357 = sphi 0, %s356
      %s373 = sphi 0, %s357
      %s377 = sphi 0, %s377
      %s379 = sphi 0, %s377
      %s380 = sphi 0, %s379
      %s394 = sphi 0, %s380
      %s398 = sphi 0, %s398
      %s400 = sphi 0, %s398
      %s401 = sphi 0, %s400
      %s415 = sphi 0, %s401
      %s421 = sphi 0, %s423
      %s424 = sphi 0, %s421
      %s425 = sphi 0, %s424
      %s441 = sphi 0, %s425
    $region4: #{predictor_pallas.1} parent=1 // loop_header_branch
      %27 = sbr.rel (%p25) target = $region8
    $region5: #{predictor_pallas.1} parent=1 // loop_body
      %s29 = ssub.s32 %s24, 1
      %s30 = ssub.s32 %s24, 2
      %s37 = sadd.s32 1, %s32
      %p38 = scmp.ge.s32.totalorder %s37, 2
      %s39 = scalar_select %p38, 0, %s37
      %s40 = sadd.s32 1, %s31
      %s41 = scalar_select %p38, %s40, %s31
      %p42 = scmp.ge.s32.totalorder %s41, 2
      %s43 = scalar_select %p42, 0, %s41
      %s44 = ssub.s32 %s31, %s43
      %p45 = scmp.eq.s32.totalorder %s44, 0
      %s47 = sadd.s32 %s46, 1
      %s48 = scalar_select %p45, %s46, %s47
      %p51 = pneg %p45
      %p52 = scmp.eq.s32.totalorder %s24, 3
      %p53 = por %p51, %p52
      %p54 = scmp.ne.s32.totalorder %s46, %s49
      %p55 = scmp.eq.s32.totalorder %s24, 0
      %p56 = por %p54, %p55
      %p57 = scmp.ne.s32.totalorder %s46, %s49
      %p58 = scmp.eq.s32.totalorder %s29, 3
      %p59 = por %p57, %p58
      %p60 = scmp.ne.s32.totalorder %s49, %s50
      %p61 = scmp.eq.s32.totalorder %s29, 0
      %p62 = por %p60, %p61
      %p63 = scmp.ne.s32.totalorder %s49, %s50
      %p64 = scmp.eq.s32.totalorder %s30, 3
      %p65 = por %p63, %p64
      %p67 = scmp.ne.s32.totalorder %s50, %s66
      %p68 = scmp.eq.s32.totalorder %s30, 0
      %p69 = por %p67, %p68
      %s71 = sadd.s32 %s70, 1
      %p74 = scmp.eq.s32.totalorder %s24, 3
      %p75 = scmp.ne.s32.totalorder %s70, %s72
      %p76 = scmp.eq.s32.totalorder %s24, 0
      %p77 = por %p75, %p76
      %p78 = scmp.ne.s32.totalorder %s70, %s72
      %p79 = scmp.eq.s32.totalorder %s29, 3
      %p80 = por %p78, %p79
      %p81 = scmp.ne.s32.totalorder %s72, %s73
      %p82 = scmp.eq.s32.totalorder %s29, 0
      %p83 = por %p81, %p82
      %p84 = scmp.ne.s32.totalorder %s72, %s73
      %p85 = scmp.eq.s32.totalorder %s30, 3
      %p86 = por %p84, %p85
      %p88 = scmp.ne.s32.totalorder %s73, %s87
      %p89 = scmp.eq.s32.totalorder %s30, 0
      %p90 = por %p88, %p89
      %s91 = ssub.s32 %s32, %s39
      %p92 = scmp.eq.s32.totalorder %s91, 0
      %s94 = sadd.s32 %s93, 1
      %s95 = scalar_select %p92, %s93, %s94
      %p98 = pneg %p92
      %p99 = scmp.eq.s32.totalorder %s24, 3
      %p100 = por %p98, %p99
      %p101 = scmp.ne.s32.totalorder %s93, %s96
      %p102 = scmp.eq.s32.totalorder %s24, 0
      %p103 = por %p101, %p102
      %p104 = scmp.ne.s32.totalorder %s93, %s96
      %p105 = scmp.eq.s32.totalorder %s29, 3
      %p106 = por %p104, %p105
      %p107 = scmp.ne.s32.totalorder %s96, %s97
      %p108 = scmp.eq.s32.totalorder %s29, 0
      %p109 = por %p107, %p108
      %p110 = scmp.ne.s32.totalorder %s96, %s97
      %p111 = scmp.eq.s32.totalorder %s30, 3
      %p112 = por %p110, %p111
      %p114 = scmp.ne.s32.totalorder %s97, %s113
      %p115 = scmp.eq.s32.totalorder %s30, 0
      %p116 = por %p114, %p115
      %s117 = ssub.s32 %s32, %s39
      %p118 = scmp.eq.s32.totalorder %s117, 0
      %s120 = sadd.s32 %s119, 1
      %s121 = scalar_select %p118, %s119, %s120
      %p124 = pneg %p118
      %p125 = scmp.eq.s32.totalorder %s24, 3
      %p126 = por %p124, %p125
      %p127 = scmp.ne.s32.totalorder %s119, %s122
      %p128 = scmp.eq.s32.totalorder %s24, 0
      %p129 = por %p127, %p128
      %p130 = scmp.ne.s32.totalorder %s119, %s122
      %p131 = scmp.eq.s32.totalorder %s29, 3
      %p132 = por %p130, %p131
      %p133 = scmp.ne.s32.totalorder %s122, %s123
      %p134 = scmp.eq.s32.totalorder %s29, 0
      %p135 = por %p133, %p134
      %p136 = scmp.ne.s32.totalorder %s122, %s123
      %p137 = scmp.eq.s32.totalorder %s30, 3
      %p138 = por %p136, %p137
      %p140 = scmp.ne.s32.totalorder %s123, %s139
      %p141 = scmp.eq.s32.totalorder %s30, 0
      %p142 = por %p140, %p141
      %s143 = ssub.s32 %s32, %s39
      %p144 = scmp.eq.s32.totalorder %s143, 0
      %s146 = sadd.s32 %s145, 1
      %s147 = scalar_select %p144, %s145, %s146
      %p150 = pneg %p144
      %p151 = scmp.eq.s32.totalorder %s24, 3
      %p152 = por %p150, %p151
      %p153 = scmp.ne.s32.totalorder %s145, %s148
      %p154 = scmp.eq.s32.totalorder %s24, 0
      %p155 = por %p153, %p154
      %p156 = scmp.ne.s32.totalorder %s145, %s148
      %p157 = scmp.eq.s32.totalorder %s29, 3
      %p158 = por %p156, %p157
      %p159 = scmp.ne.s32.totalorder %s148, %s149
      %p160 = scmp.eq.s32.totalorder %s29, 0
      %p161 = por %p159, %p160
      %p162 = scmp.ne.s32.totalorder %s148, %s149
      %p163 = scmp.eq.s32.totalorder %s30, 3
      %p164 = por %p162, %p163
      %p166 = scmp.ne.s32.totalorder %s149, %s165
      %p167 = scmp.eq.s32.totalorder %s30, 0
      %p168 = por %p166, %p167
      %s169 = ssub.s32 %s32, %s39
      %p170 = scmp.eq.s32.totalorder %s169, 0
      %s172 = sadd.s32 %s171, 1
      %s173 = scalar_select %p170, %s171, %s172
      %p176 = pneg %p170
      %p177 = scmp.eq.s32.totalorder %s24, 3
      %p178 = por %p176, %p177
      %p179 = scmp.ne.s32.totalorder %s171, %s174
      %p180 = scmp.eq.s32.totalorder %s24, 0
      %p181 = por %p179, %p180
      %p182 = scmp.ne.s32.totalorder %s171, %s174
      %p183 = scmp.eq.s32.totalorder %s29, 3
      %p184 = por %p182, %p183
      %p185 = scmp.ne.s32.totalorder %s174, %s175
      %p186 = scmp.eq.s32.totalorder %s29, 0
      %p187 = por %p185, %p186
      %p188 = scmp.ne.s32.totalorder %s174, %s175
      %p189 = scmp.eq.s32.totalorder %s30, 3
      %p190 = por %p188, %p189
      %p192 = scmp.ne.s32.totalorder %s175, %s191
      %p193 = scmp.eq.s32.totalorder %s30, 0
      %p194 = por %p192, %p193
      %s195 = ssub.s32 %s32, %s39
      %p196 = scmp.eq.s32.totalorder %s195, 0
      %s198 = sadd.s32 %s197, 1
      %s199 = scalar_select %p196, %s197, %s198
      %p202 = pneg %p196
      %p203 = scmp.eq.s32.totalorder %s24, 3
      %p204 = por %p202, %p203
      %p205 = scmp.ne.s32.totalorder %s197, %s200
      %p206 = scmp.eq.s32.totalorder %s24, 0
      %p207 = por %p205, %p206
      %p208 = scmp.ne.s32.totalorder %s197, %s200
      %p209 = scmp.eq.s32.totalorder %s29, 3
      %p210 = por %p208, %p209
      %p211 = scmp.ne.s32.totalorder %s200, %s201
      %p212 = scmp.eq.s32.totalorder %s29, 0
      %p213 = por %p211, %p212
      %p214 = scmp.ne.s32.totalorder %s200, %s201
      %p215 = scmp.eq.s32.totalorder %s30, 3
      %p216 = por %p214, %p215
      %p218 = scmp.ne.s32.totalorder %s201, %s217
      %p219 = scmp.eq.s32.totalorder %s30, 0
      %p220 = por %p218, %p219
      %s221 = ssub.s32 %s32, %s39
      %p222 = scmp.eq.s32.totalorder %s221, 0
      %s224 = sadd.s32 %s223, 1
      %s225 = scalar_select %p222, %s223, %s224
      %p228 = pneg %p222
      %p229 = scmp.eq.s32.totalorder %s24, 3
      %p230 = por %p228, %p229
      %p231 = scmp.ne.s32.totalorder %s223, %s226
      %p232 = scmp.eq.s32.totalorder %s24, 0
      %p233 = por %p231, %p232
      %p234 = scmp.ne.s32.totalorder %s223, %s226
      %p235 = scmp.eq.s32.totalorder %s29, 3
      %p236 = por %p234, %p235
      %p237 = scmp.ne.s32.totalorder %s226, %s227
      %p238 = scmp.eq.s32.totalorder %s29, 0
      %p239 = por %p237, %p238
      %p240 = scmp.ne.s32.totalorder %s226, %s227
      %p241 = scmp.eq.s32.totalorder %s30, 3
      %p242 = por %p240, %p241
      %p244 = scmp.ne.s32.totalorder %s227, %s243
      %p245 = scmp.eq.s32.totalorder %s30, 0
      %p246 = por %p244, %p245
      %s247 = ssub.s32 %s32, %s39
      %p248 = scmp.eq.s32.totalorder %s247, 0
      %s250 = sadd.s32 %s249, 1
      %s251 = scalar_select %p248, %s249, %s250
      %p254 = pneg %p248
      %p255 = scmp.eq.s32.totalorder %s24, 3
      %p256 = por %p254, %p255
      %p257 = scmp.ne.s32.totalorder %s249, %s252
      %p258 = scmp.eq.s32.totalorder %s24, 0
      %p259 = por %p257, %p258
      %p260 = scmp.ne.s32.totalorder %s249, %s252
      %p261 = scmp.eq.s32.totalorder %s29, 3
      %p262 = por %p260, %p261
      %p263 = scmp.ne.s32.totalorder %s252, %s253
      %p264 = scmp.eq.s32.totalorder %s29, 0
      %p265 = por %p263, %p264
      %p266 = scmp.ne.s32.totalorder %s252, %s253
      %p267 = scmp.eq.s32.totalorder %s30, 3
      %p268 = por %p266, %p267
      %p270 = scmp.ne.s32.totalorder %s253, %s269
      %p271 = scmp.eq.s32.totalorder %s30, 0
      %p272 = por %p270, %p271
      %s273 = ssub.s32 %s32, %s39
      %p274 = scmp.eq.s32.totalorder %s273, 0
      %s276 = sadd.s32 %s275, 1
      %s277 = scalar_select %p274, %s275, %s276
      %p280 = pneg %p274
      %p281 = scmp.eq.s32.totalorder %s24, 3
      %p282 = por %p280, %p281
      %p283 = scmp.ne.s32.totalorder %s275, %s278
      %p284 = scmp.eq.s32.totalorder %s24, 0
      %p285 = por %p283, %p284
      %p286 = scmp.ne.s32.totalorder %s275, %s278
      %p287 = scmp.eq.s32.totalorder %s29, 3
      %p288 = por %p286, %p287
      %p289 = scmp.ne.s32.totalorder %s278, %s279
      %p290 = scmp.eq.s32.totalorder %s29, 0
      %p291 = por %p289, %p290
      %p292 = scmp.ne.s32.totalorder %s278, %s279
      %p293 = scmp.eq.s32.totalorder %s30, 3
      %p294 = por %p292, %p293
      %p296 = scmp.ne.s32.totalorder %s279, %s295
      %p297 = scmp.eq.s32.totalorder %s30, 0
      %p298 = por %p296, %p297
      %s299 = ssub.s32 %s32, %s39
      %p300 = scmp.eq.s32.totalorder %s299, 0
      %s302 = sadd.s32 %s301, 1
      %s303 = scalar_select %p300, %s301, %s302
      %p306 = pneg %p300
      %p307 = scmp.eq.s32.totalorder %s24, 3
      %p308 = por %p306, %p307
      %p309 = scmp.ne.s32.totalorder %s301, %s304
      %p310 = scmp.eq.s32.totalorder %s24, 0
      %p311 = por %p309, %p310
      %p312 = scmp.ne.s32.totalorder %s301, %s304
      %p313 = scmp.eq.s32.totalorder %s29, 3
      %p314 = por %p312, %p313
      %p315 = scmp.ne.s32.totalorder %s304, %s305
      %p316 = scmp.eq.s32.totalorder %s29, 0
      %p317 = por %p315, %p316
      %p318 = scmp.ne.s32.totalorder %s304, %s305
      %p319 = scmp.eq.s32.totalorder %s30, 3
      %p320 = por %p318, %p319
      %p322 = scmp.ne.s32.totalorder %s305, %s321
      %p323 = scmp.eq.s32.totalorder %s30, 0
      %p324 = por %p322, %p323
      %s325 = ssub.s32 %s32, %s39
      %p326 = scmp.eq.s32.totalorder %s325, 0
      %s328 = sadd.s32 %s327, 1
      %s329 = scalar_select %p326, %s327, %s328
      %p332 = pneg %p326
      %p333 = scmp.eq.s32.totalorder %s24, 3
      %p334 = por %p332, %p333
      %p335 = scmp.ne.s32.totalorder %s327, %s330
      %p336 = scmp.eq.s32.totalorder %s24, 0
      %p337 = por %p335, %p336
      %p338 = scmp.ne.s32.totalorder %s327, %s330
      %p339 = scmp.eq.s32.totalorder %s29, 3
      %p340 = por %p338, %p339
      %p341 = scmp.ne.s32.totalorder %s330, %s331
      %p342 = scmp.eq.s32.totalorder %s29, 0
      %p343 = por %p341, %p342
      %p344 = scmp.ne.s32.totalorder %s330, %s331
      %p345 = scmp.eq.s32.totalorder %s30, 3
      %p346 = por %p344, %p345
      %p348 = scmp.ne.s32.totalorder %s331, %s347
      %p349 = scmp.eq.s32.totalorder %s30, 0
      %p350 = por %p348, %p349
      %s351 = ssub.s32 %s32, %s39
      %p352 = scmp.eq.s32.totalorder %s351, 0
      %s354 = sadd.s32 %s353, 1
      %s355 = scalar_select %p352, %s353, %s354
      %p358 = pneg %p352
      %p359 = scmp.eq.s32.totalorder %s24, 3
      %p360 = por %p358, %p359
      %p361 = scmp.ne.s32.totalorder %s353, %s356
      %p362 = scmp.eq.s32.totalorder %s24, 0
      %p363 = por %p361, %p362
      %p364 = scmp.ne.s32.totalorder %s353, %s356
      %p365 = scmp.eq.s32.totalorder %s29, 3
      %p366 = por %p364, %p365
      %p367 = scmp.ne.s32.totalorder %s356, %s357
      %p368 = scmp.eq.s32.totalorder %s29, 0
      %p369 = por %p367, %p368
      %p370 = scmp.ne.s32.totalorder %s356, %s357
      %p371 = scmp.eq.s32.totalorder %s30, 3
      %p372 = por %p370, %p371
      %p374 = scmp.ne.s32.totalorder %s357, %s373
      %p375 = scmp.eq.s32.totalorder %s30, 0
      %p376 = por %p374, %p375
      %s378 = sadd.s32 %s377, 1
      %p381 = scmp.eq.s32.totalorder %s24, 3
      %p382 = scmp.ne.s32.totalorder %s377, %s379
      %p383 = scmp.eq.s32.totalorder %s24, 0
      %p384 = por %p382, %p383
      %p385 = scmp.ne.s32.totalorder %s377, %s379
      %p386 = scmp.eq.s32.totalorder %s29, 3
      %p387 = por %p385, %p386
      %p388 = scmp.ne.s32.totalorder %s379, %s380
      %p389 = scmp.eq.s32.totalorder %s29, 0
      %p390 = por %p388, %p389
      %p391 = scmp.ne.s32.totalorder %s379, %s380
      %p392 = scmp.eq.s32.totalorder %s30, 3
      %p393 = por %p391, %p392
      %p395 = scmp.ne.s32.totalorder %s380, %s394
      %p396 = scmp.eq.s32.totalorder %s30, 0
      %p397 = por %p395, %p396
      %s399 = sadd.s32 %s398, 1
      %p402 = scmp.eq.s32.totalorder %s24, 3
      %p403 = scmp.ne.s32.totalorder %s398, %s400
      %p404 = scmp.eq.s32.totalorder %s24, 0
      %p405 = por %p403, %p404
      %p406 = scmp.ne.s32.totalorder %s398, %s400
      %p407 = scmp.eq.s32.totalorder %s29, 3
      %p408 = por %p406, %p407
      %p409 = scmp.ne.s32.totalorder %s400, %s401
      %p410 = scmp.eq.s32.totalorder %s29, 0
      %p411 = por %p409, %p410
      %p412 = scmp.ne.s32.totalorder %s400, %s401
      %p413 = scmp.eq.s32.totalorder %s30, 3
      %p414 = por %p412, %p413
      %p416 = scmp.ne.s32.totalorder %s401, %s415
      %p417 = scmp.eq.s32.totalorder %s30, 0
      %p418 = por %p416, %p417
      %s419 = ssub.s32 %s31, %s43
      %p420 = scmp.eq.s32.totalorder %s419, 0
      %s422 = sadd.s32 %s421, 1
      %s423 = scalar_select %p420, %s421, %s422
      %p426 = pneg %p420
      %p427 = scmp.eq.s32.totalorder %s24, 3
      %p428 = por %p426, %p427
      %p429 = scmp.ne.s32.totalorder %s421, %s424
      %p430 = scmp.eq.s32.totalorder %s24, 0
      %p431 = por %p429, %p430
      %p432 = scmp.ne.s32.totalorder %s421, %s424
      %p433 = scmp.eq.s32.totalorder %s29, 3
      %p434 = por %p432, %p433
      %p435 = scmp.ne.s32.totalorder %s424, %s425
      %p436 = scmp.eq.s32.totalorder %s29, 0
      %p437 = por %p435, %p436
      %p438 = scmp.ne.s32.totalorder %s424, %s425
      %p439 = scmp.eq.s32.totalorder %s30, 3
      %p440 = por %p438, %p439
      %p442 = scmp.ne.s32.totalorder %s425, %s441
      %p443 = scmp.eq.s32.totalorder %s30, 0
      %p444 = por %p442, %p443
      %p445 = scmp.le.s32.totalorder 1, %s24
      %p446 = scmp.lt.s32.totalorder %s24, 5
      %p447 = pnand %p445, %p446
      %p448 = pneg %p447
      // Predicated region
      $region9: #{predictor_pallas.1} parent=5 // pred_check
        _
      $region10: #{predictor_pallas.1} parent=5 // pred_check_branch
        %450 = sbr.rel (%p447) target = $region12
      $region11: #{predictor_pallas.1} parent=5 // pred_region
        %s451 = ssub.s32 %s24, 1
        // Predicated region
        $region13: #{predictor_pallas.1} parent=11 // pred_check
          %p452 = pneg %p83
        $region14: #{predictor_pallas.1} parent=11 // pred_check_branch
          %454 = sbr.rel (%p452) target = $region16
        $region15: #{predictor_pallas.1} parent=11 // pred_region
          _
        $region16: #{predictor_pallas.1} parent=11 // pred_fallthru
          _
        // Predicated region
        $region17: #{predictor_pallas.1} parent=11 // pred_check
          %p455 = pneg %p390
        $region18: #{predictor_pallas.1} parent=11 // pred_check_branch
          %457 = sbr.rel (%p455) target = $region20
        $region19: #{predictor_pallas.1} parent=11 // pred_region
          _
        $region20: #{predictor_pallas.1} parent=11 // pred_fallthru
          _
        // Predicated region
        $region21: #{predictor_pallas.1} parent=11 // pred_check
          %p458 = pneg %p411
        $region22: #{predictor_pallas.1} parent=11 // pred_check_branch
          %460 = sbr.rel (%p458) target = $region24
        $region23: #{predictor_pallas.1} parent=11 // pred_region
          _
        $region24: #{predictor_pallas.1} parent=11 // pred_fallthru
          _
      $region12: #{predictor_pallas.1} parent=5 // pred_fallthru
        _
      %p461 = scmp.lt.s32.totalorder %s24, 4
      // Predicated region
      $region25: #{predictor_pallas.1} parent=5 // pred_check
        %p462 = pneg %p461
      $region26: #{predictor_pallas.1} parent=5 // pred_check_branch
        %464 = sbr.rel (%p462) target = $region28
      $region27: #{predictor_pallas.1} parent=5 // pred_region
        // Predicated region
        $region29: #{predictor_pallas.1} parent=27 // pred_check
          %p465 = pneg %p56
        $region30: #{predictor_pallas.1} parent=27 // pred_check_branch
          %467 = sbr.rel (%p465) target = $region32
        $region31: #{predictor_pallas.1} parent=27 // pred_region
          %p468 = scmp.lt.s32.totalorder %s31, 1
          %s469 = scalar_select %p468, %s31, 1
          %s470 = smul.addr %s469, 8
          %s471 = scalar_lea.vmem %s0, %s470
        $region32: #{predictor_pallas.1} parent=27 // pred_fallthru
          _
        // Predicated region
        $region33: #{predictor_pallas.1} parent=27 // pred_check
          %p472 = pneg %p103
        $region34: #{predictor_pallas.1} parent=27 // pred_check_branch
          %474 = sbr.rel (%p472) target = $region36
        $region35: #{predictor_pallas.1} parent=27 // pred_region
          %p475 = scmp.lt.s32.totalorder %s32, 1
          %s476 = scalar_select %p475, %s32, 1
          %s477 = scalar_lea.vmem %s2, %s476
        $region36: #{predictor_pallas.1} parent=27 // pred_fallthru
          _
        // Predicated region
        $region37: #{predictor_pallas.1} parent=27 // pred_check
          %p478 = pneg %p129
        $region38: #{predictor_pallas.1} parent=27 // pred_check_branch
          %480 = sbr.rel (%p478) target = $region40
        $region39: #{predictor_pallas.1} parent=27 // pred_region
          %p481 = scmp.lt.s32.totalorder %s32, 1
          %s482 = scalar_select %p481, %s32, 1
          %s483 = scalar_lea.vmem %s3, %s482
        $region40: #{predictor_pallas.1} parent=27 // pred_fallthru
          _
        // Predicated region
        $region41: #{predictor_pallas.1} parent=27 // pred_check
          %p484 = pneg %p155
        $region42: #{predictor_pallas.1} parent=27 // pred_check_branch
          %486 = sbr.rel (%p484) target = $region44
        $region43: #{predictor_pallas.1} parent=27 // pred_region
          %p487 = scmp.lt.s32.totalorder %s32, 1
          %s488 = scalar_select %p487, %s32, 1
          %s489 = smul.addr %s488, 4
          %s490 = smul.addr %s489, 4
          %s491 = scalar_lea.vmem %s4, %s490
        $region44: #{predictor_pallas.1} parent=27 // pred_fallthru
          _
        // Predicated region
        $region45: #{predictor_pallas.1} parent=27 // pred_check
          %p492 = pneg %p181
        $region46: #{predictor_pallas.1} parent=27 // pred_check_branch
          %494 = sbr.rel (%p492) target = $region48
        $region47: #{predictor_pallas.1} parent=27 // pred_region
          %p495 = scmp.lt.s32.totalorder %s32, 1
          %s496 = scalar_select %p495, %s32, 1
          %s497 = smul.addr %s496, 4
          %s498 = smul.addr %s497, 4
          %s499 = scalar_lea.vmem %s5, %s498
        $region48: #{predictor_pallas.1} parent=27 // pred_fallthru
          _
        // Predicated region
        $region49: #{predictor_pallas.1} parent=27 // pred_check
          %p500 = pneg %p207
        $region50: #{predictor_pallas.1} parent=27 // pred_check_branch
          %502 = sbr.rel (%p500) target = $region52
        $region51: #{predictor_pallas.1} parent=27 // pred_region
          %p503 = scmp.lt.s32.totalorder %s32, 1
          %s504 = scalar_select %p503, %s32, 1
          %s505 = scalar_lea.vmem %s6, %s504
        $region52: #{predictor_pallas.1} parent=27 // pred_fallthru
          _
        // Predicated region
        $region53: #{predictor_pallas.1} parent=27 // pred_check
          %p506 = pneg %p233
        $region54: #{predictor_pallas.1} parent=27 // pred_check_branch
          %508 = sbr.rel (%p506) target = $region56
        $region55: #{predictor_pallas.1} parent=27 // pred_region
          %p509 = scmp.lt.s32.totalorder %s32, 1
          %s510 = scalar_select %p509, %s32, 1
          %s511 = scalar_lea.vmem %s7, %s510
        $region56: #{predictor_pallas.1} parent=27 // pred_fallthru
          _
        // Predicated region
        $region57: #{predictor_pallas.1} parent=27 // pred_check
          %p512 = pneg %p259
        $region58: #{predictor_pallas.1} parent=27 // pred_check_branch
          %514 = sbr.rel (%p512) target = $region60
        $region59: #{predictor_pallas.1} parent=27 // pred_region
          %p515 = scmp.lt.s32.totalorder %s32, 1
          %s516 = scalar_select %p515, %s32, 1
          %s517 = scalar_lea.vmem %s8, %s516
        $region60: #{predictor_pallas.1} parent=27 // pred_fallthru
          _
        // Predicated region
        $region61: #{predictor_pallas.1} parent=27 // pred_check
          %p518 = pneg %p285
        $region62: #{predictor_pallas.1} parent=27 // pred_check_branch
          %520 = sbr.rel (%p518) target = $region64
        $region63: #{predictor_pallas.1} parent=27 // pred_region
          %p521 = scmp.lt.s32.totalorder %s32, 1
          %s522 = scalar_select %p521, %s32, 1
          %s523 = smul.addr %s522, 4
          %s524 = smul.addr %s523, 4
          %s525 = scalar_lea.vmem %s9, %s524
        $region64: #{predictor_pallas.1} parent=27 // pred_fallthru
          _
        // Predicated region
        $region65: #{predictor_pallas.1} parent=27 // pred_check
          %p526 = pneg %p311
        $region66: #{predictor_pallas.1} parent=27 // pred_check_branch
          %528 = sbr.rel (%p526) target = $region68
        $region67: #{predictor_pallas.1} parent=27 // pred_region
          %p529 = scmp.lt.s32.totalorder %s32, 1
          %s530 = scalar_select %p529, %s32, 1
          %s531 = scalar_lea.vmem %s10, %s530
        $region68: #{predictor_pallas.1} parent=27 // pred_fallthru
          _
        // Predicated region
        $region69: #{predictor_pallas.1} parent=27 // pred_check
          %p532 = pneg %p337
        $region70: #{predictor_pallas.1} parent=27 // pred_check_branch
          %534 = sbr.rel (%p532) target = $region72
        $region71: #{predictor_pallas.1} parent=27 // pred_region
          %p535 = scmp.lt.s32.totalorder %s32, 1
          %s536 = scalar_select %p535, %s32, 1
          %s537 = smul.addr %s536, 16
          %s538 = smul.addr %s537, 4
          %s539 = scalar_lea.vmem %s11, %s538
        $region72: #{predictor_pallas.1} parent=27 // pred_fallthru
          _
        // Predicated region
        $region73: #{predictor_pallas.1} parent=27 // pred_check
          %p540 = pneg %p363
        $region74: #{predictor_pallas.1} parent=27 // pred_check_branch
          %542 = sbr.rel (%p540) target = $region76
        $region75: #{predictor_pallas.1} parent=27 // pred_region
          %p543 = scmp.lt.s32.totalorder %s32, 1
          %s544 = scalar_select %p543, %s32, 1
          %s545 = scalar_lea.vmem %s12, %s544
        $region76: #{predictor_pallas.1} parent=27 // pred_fallthru
          _
      $region28: #{predictor_pallas.1} parent=5 // pred_fallthru
        _
      %p546 = scmp.le.s32.totalorder 1, %s24
      %p547 = scmp.lt.s32.totalorder %s24, 5
      %p548 = pnand %p546, %p547
      %p549 = pneg %p548
      // Predicated region
      $region77: #{predictor_pallas.1} parent=5 // pred_check
        _
      $region78: #{predictor_pallas.1} parent=5 // pred_check_branch
        %551 = sbr.rel (%p548) target = $region80
      $region79: #{predictor_pallas.1} parent=5 // pred_region
        %s552 = ssub.s32 %s24, 1
        %p553 = scmp.lt.s32.totalorder %s33, 1
        %s554 = scalar_select %p553, %s33, 1
        %s555 = smul.addr %s554, 8
        %s556 = scalar_lea.vmem %s0, %s555
        %p557 = pneg %p62
        %p558 = pneg %p59
        %p559 = pneg %p83
        %p560 = pneg %p80
        %p561 = scmp.lt.s32.totalorder %s34, 1
        %s562 = scalar_select %p561, %s34, 1
        %s563 = scalar_lea.vmem %s2, %s562
        %p564 = pneg %p109
        %p565 = pneg %p106
        %p566 = scmp.lt.s32.totalorder %s34, 1
        %s567 = scalar_select %p566, %s34, 1
        %s568 = scalar_lea.vmem %s3, %s567
        %p569 = pneg %p135
        %p570 = pneg %p132
        %p571 = scmp.lt.s32.totalorder %s34, 1
        %s572 = scalar_select %p571, %s34, 1
        %s573 = smul.addr %s572, 4
        %s574 = smul.addr %s573, 4
        %s575 = scalar_lea.vmem %s4, %s574
        %p576 = pneg %p161
        %p577 = pneg %p158
        %p578 = scmp.lt.s32.totalorder %s34, 1
        %s579 = scalar_select %p578, %s34, 1
        %s580 = smul.addr %s579, 4
        %s581 = smul.addr %s580, 4
        %s582 = scalar_lea.vmem %s5, %s581
        %p583 = pneg %p187
        %p584 = pneg %p184
        %p585 = scmp.lt.s32.totalorder %s34, 1
        %s586 = scalar_select %p585, %s34, 1
        %s587 = scalar_lea.vmem %s6, %s586
        %p588 = pneg %p213
        %p589 = pneg %p210
        %p590 = scmp.lt.s32.totalorder %s34, 1
        %s591 = scalar_select %p590, %s34, 1
        %s592 = scalar_lea.vmem %s7, %s591
        %p593 = pneg %p239
        %p594 = pneg %p236
        %p595 = scmp.lt.s32.totalorder %s34, 1
        %s596 = scalar_select %p595, %s34, 1
        %s597 = scalar_lea.vmem %s8, %s596
        %p598 = pneg %p265
        %p599 = pneg %p262
        %p600 = scmp.lt.s32.totalorder %s34, 1
        %s601 = scalar_select %p600, %s34, 1
        %s602 = smul.addr %s601, 4
        %s603 = smul.addr %s602, 4
        %s604 = scalar_lea.vmem %s9, %s603
        %p605 = pneg %p291
        %p606 = pneg %p288
        %p607 = scmp.lt.s32.totalorder %s34, 1
        %s608 = scalar_select %p607, %s34, 1
        %s609 = scalar_lea.vmem %s10, %s608
        %p610 = pneg %p317
        %p611 = pneg %p314
        %p612 = scmp.lt.s32.totalorder %s34, 1
        %s613 = scalar_select %p612, %s34, 1
        %s614 = smul.addr %s613, 16
        %s615 = smul.addr %s614, 4
        %s616 = scalar_lea.vmem %s11, %s615
        %p617 = pneg %p343
        %p618 = pneg %p340
        %p619 = scmp.lt.s32.totalorder %s34, 1
        %s620 = scalar_select %p619, %s34, 1
        %s621 = scalar_lea.vmem %s12, %s620
        %p622 = pneg %p369
        %p623 = pneg %p366
        %p624 = pneg %p390
        %p625 = pneg %p387
        %p626 = pneg %p411
        %p627 = pneg %p408
        %p628 = pneg %p437
        %p629 = pneg %p434
        %s630 = sand.u32 %s424, 1
        %s631 = scalar_lea.sflag [#allocation5], %s630
        %s632 = sand.u32 %s424, 1
        %s633 = smul.addr %s632, 8
        %s634 = scalar_lea.vmem [#allocation4], %s633
        %p635 = scmp.lt.s32.totalorder %s33, 1
        %s636 = scalar_select %p635, %s33, 1
        %s637 = smul.addr %s636, 8
        %s638 = scalar_lea.vmem %s0, %s637
        %p639 = scmp.lt.s32.totalorder %s34, 1
        %s640 = scalar_select %p639, %s34, 1
        %s641 = scalar_lea.vmem %s2, %s640
        %p642 = scmp.lt.s32.totalorder %s34, 1
        %s643 = scalar_select %p642, %s34, 1
        %s644 = scalar_lea.vmem %s3, %s643
        %p645 = scmp.lt.s32.totalorder %s34, 1
        %s646 = scalar_select %p645, %s34, 1
        %s647 = smul.addr %s646, 4
        %s648 = smul.addr %s647, 4
        %s649 = scalar_lea.vmem %s4, %s648
        %p650 = scmp.lt.s32.totalorder %s34, 1
        %s651 = scalar_select %p650, %s34, 1
        %s652 = smul.addr %s651, 4
        %s653 = smul.addr %s652, 4
        %s654 = scalar_lea.vmem %s5, %s653
        %p655 = scmp.lt.s32.totalorder %s34, 1
        %s656 = scalar_select %p655, %s34, 1
        %s657 = scalar_lea.vmem %s6, %s656
        %p658 = scmp.lt.s32.totalorder %s34, 1
        %s659 = scalar_select %p658, %s34, 1
        %s660 = scalar_lea.vmem %s7, %s659
        %p661 = scmp.lt.s32.totalorder %s34, 1
        %s662 = scalar_select %p661, %s34, 1
        %s663 = scalar_lea.vmem %s8, %s662
        %p664 = scmp.lt.s32.totalorder %s34, 1
        %s665 = scalar_select %p664, %s34, 1
        %s666 = smul.addr %s665, 4
        %s667 = smul.addr %s666, 4
        %s668 = scalar_lea.vmem %s9, %s667
        %p669 = scmp.lt.s32.totalorder %s34, 1
        %s670 = scalar_select %p669, %s34, 1
        %s671 = scalar_lea.vmem %s10, %s670
        %p672 = scmp.lt.s32.totalorder %s34, 1
        %s673 = scalar_select %p672, %s34, 1
        %s674 = smul.addr %s673, 16
        %s675 = smul.addr %s674, 4
        %s676 = scalar_lea.vmem %s11, %s675
        %p677 = scmp.lt.s32.totalorder %s34, 1
        %s678 = scalar_select %p677, %s34, 1
        %s679 = scalar_lea.vmem %s12, %s678
        %p681 = scmp.eq.s32.totalorder %s34, 0
        // Predicated region
        $region81: #{predictor_pallas.1} parent=79 // pred_check
          %p682 = pneg %p681
        $region82: #{predictor_pallas.1} parent=79 // pred_check_branch
          %684 = sbr.rel (%p682) target = $region84
        $region83: #{predictor_pallas.1} parent=79 // pred_region
          %v685 = vld [vmem:[%s638] sm:$0xff]
          %v686 = vpack.c.bf16 %v685, %v685
          %v687 = vld [vmem:[%s1] sm:$0xf]
          %v688 = vld [vmem:[%s1 + $0x4] sm:$0xf]
          %v691 = vunpack.c.l.b16 %v687
          %v692 = vunpack.c.l.b16 %v688
          %v693 = vpack.c.b16 %v692, %v691
          %vm695 = vcmask 130048
          %v697 = vsel %vm695, %v686, 0
          %699 = vmatprep.subr.bf16.mxu0 0
          %700 = vmatpush1.bf16.msra.mxu0 %v693
          %701 = vmatprep.subr.bf16.mxu0 0
          %702 = vmatpush1.bf16.msra.mxu0 0
          %703 = vmatprep.subr.bf16.mxu0 0
          %704 = vmatpush1.bf16.msra.mxu0 0
          %705 = vmatprep.subr.bf16.mxu0 0
          %706 = vmatpush1.bf16.msra.mxu0 0
          %707 = vmatprep.subr.bf16.mxu0 0
          %708 = vmatpush1.bf16.msra.mxu0 0
          %709 = vmatprep.subr.bf16.mxu0 0
          %710 = vmatpush1.bf16.msra.mxu0 0
          %711 = vmatprep.subr.bf16.mxu0 0
          %712 = vmatpush1.bf16.msra.mxu0 0
          %713 = vmatprep.subr.bf16.mxu0 0
          %714 = vmatpush1.bf16.msra.mxu0 0
          %715 = vmatprep.subr.bf16.mxu0 0
          %716 = vmatpush1.bf16.msra.mxu0 0
          %717 = vmatprep.subr.bf16.mxu0 0
          %718 = vmatpush1.bf16.msra.mxu0 0
          %719 = vmatprep.subr.bf16.mxu0 0
          %720 = vmatpush1.bf16.msra.mxu0 0
          %721 = vmatprep.subr.bf16.mxu0 0
          %722 = vmatpush1.bf16.msra.mxu0 0
          %723 = vmatprep.subr.bf16.mxu0 0
          %724 = vmatpush1.bf16.msra.mxu0 0
          %725 = vmatprep.subr.bf16.mxu0 0
          %726 = vmatpush1.bf16.msra.mxu0 0
          %727 = vmatprep.subr.bf16.mxu0 0
          %728 = vmatpush1.bf16.msra.mxu0 0
          %729 = vmatprep.subr.bf16.mxu0 0
          %730 = vmatpush1.bf16.msra.mxu0 0
          %731 = vmatprep.mubr.bf16.mxu0 0
          %732 = vmatmul.mubr.bf16.gmra.mrb[0].mxu0 %v697
          %v733 = vpop.f32.mrb[0].mxu0
          %v734 = vadd.f32 0.0, %v733
          %v735 = vpop.f32.mrb[0].mxu0
          %v736 = vpop.f32.mrb[0].mxu0
          %v737 = vpop.f32.mrb[0].mxu0
          %738 = vdwg.mxu0
          %vm739 = vcmask 261120
          %740 = vst.msk [vmem:[#allocation2] sm:$0xff] %vm739, %v734
        $region84: #{predictor_pallas.1} parent=79 // pred_fallthru
          _
        %v741 = vld [vmem:[#allocation2] sm:$0xff]
        %v742 = vld [vmem:[%s641] sm:$0x1]
        %v743 = vld [vmem:[%s644] sm:$0x1]
        %vm744 = vcmask 261120
        %v745 = vsel %vm744, %v741, 0.0
        %746 = vadd.xlane.f32.xlu0 %v745
        %v747 = vpop.xlane.xlu0 %746
        %v748 = vrcp.pop 32.0
        %v749 = vmul.f32 %v747, %v748
        %v750 = vsub.f32 %v741, %v749
        %v751 = vmul.f32 %v750, %v750
        %v752 = vsel %vm744, %v751, 0.0
        %753 = vadd.xlane.f32.xlu0 %v752
        %v754 = vpop.xlane.xlu0 %753
        %v755 = vmul.f32 %v754, %v748
        %v756 = vadd.f32 %v755, 1e-05
        %v757 = vrsqrt.pop %v756
        %v758 = vmul.f32 %v750, %v757
        %v760 = vlaneseq
        %v761 = vshrl.u32 %v760, 7
        %v762 = vsub.s32 0, %v761
        %v763 = vrot.slane %v742, %v762
        %v765 = vmul.f32 %v758, %v763
        %v767 = vlaneseq
        %v768 = vshrl.u32 %v767, 7
        %v769 = vsub.s32 0, %v768
        %v770 = vrot.slane %v743, %v769
        %v772 = vadd.f32 %v765, %v770
        %v773 = vpack.c.bf16 %v772, %v772
        %v774 = vld [vmem:[%s649] sm:$0xf]
        %v775 = vld [vmem:[%s649 + $0x4] sm:$0xf]
        %v776 = vld [vmem:[%s649 + $0x8] sm:$0xf]
        %v777 = vld [vmem:[%s649 + $0xc] sm:$0xf]
        %v782 = vunpack.c.l.b16 %v774
        %v783 = vunpack.c.l.b16 %v775
        %v784 = vunpack.c.l.b16 %v776
        %v785 = vunpack.c.l.b16 %v777
        %v786 = vpack.c.b16 %v783, %v782
        %v787 = vpack.c.b16 %v785, %v784
        %v791 = vsel %vm744, %v773, 0
        %793 = vmatprep.subr.bf16.mxu0 0
        %794 = vmatpush1.bf16.msra.mxu0 %v786
        %795 = vmatprep.subr.bf16.mxu0 0
        %796 = vmatpush1.bf16.msra.mxu0 %v787
        %797 = vmatprep.subr.bf16.mxu0 0
        %798 = vmatpush1.bf16.msra.mxu0 0
        %799 = vmatprep.subr.bf16.mxu0 0
        %800 = vmatpush1.bf16.msra.mxu0 0
        %801 = vmatprep.subr.bf16.mxu0 0
        %802 = vmatpush1.bf16.msra.mxu0 0
        %803 = vmatprep.subr.bf16.mxu0 0
        %804 = vmatpush1.bf16.msra.mxu0 0
        %805 = vmatprep.subr.bf16.mxu0 0
        %806 = vmatpush1.bf16.msra.mxu0 0
        %807 = vmatprep.subr.bf16.mxu0 0
        %808 = vmatpush1.bf16.msra.mxu0 0
        %809 = vmatprep.subr.bf16.mxu0 0
        %810 = vmatpush1.bf16.msra.mxu0 0
        %811 = vmatprep.subr.bf16.mxu0 0
        %812 = vmatpush1.bf16.msra.mxu0 0
        %813 = vmatprep.subr.bf16.mxu0 0
        %814 = vmatpush1.bf16.msra.mxu0 0
        %815 = vmatprep.subr.bf16.mxu0 0
        %816 = vmatpush1.bf16.msra.mxu0 0
        %817 = vmatprep.subr.bf16.mxu0 0
        %818 = vmatpush1.bf16.msra.mxu0 0
        %819 = vmatprep.subr.bf16.mxu0 0
        %820 = vmatpush1.bf16.msra.mxu0 0
        %821 = vmatprep.subr.bf16.mxu0 0
        %822 = vmatpush1.bf16.msra.mxu0 0
        %823 = vmatprep.subr.bf16.mxu0 0
        %824 = vmatpush1.bf16.msra.mxu0 0
        %825 = vmatprep.mubr.bf16.mxu0 0
        %826 = vmatmul.mubr.bf16.gmra.mrb[0].mxu0 %v791
        %v827 = vpop.f32.mrb[0].mxu0
        %v828 = vadd.f32 0.0, %v827
        %v829 = vpop.f32.mrb[0].mxu0
        %v830 = vpop.f32.mrb[0].mxu0
        %v831 = vpop.f32.mrb[0].mxu0
        %832 = vdwg.mxu0
        %v833 = vmul.f32 %v828, 0.35355338
        %v834 = vpack.c.bf16 %v833, %v833
        %v835 = vpack.c.bf16 %v828, %v828
        %837 = vrot.lane.b32.xlu0 %v835, 96
        %v838 = vpop.permute.xlu0 %837
        %vm839 = vcmask 64512
        %v841 = vsel %vm839, %v834, 0
        %v844 = vsel %vm839, %v838, 0
        %846 = vmatprep.subr.bf16.mxu0 0
        %847 = vmatpush1.bf16.xpose.msra.mxu0 %v844
        %848 = vmatprep.subr.bf16.mxu0 0
        %849 = vmatpush1.bf16.xpose.msra.mxu0 0
        %850 = vmatprep.subr.bf16.mxu0 0
        %851 = vmatpush1.bf16.xpose.msra.mxu0 0
        %852 = vmatprep.subr.bf16.mxu0 0
        %853 = vmatpush1.bf16.xpose.msra.mxu0 0
        %854 = vmatprep.subr.bf16.mxu0 0
        %855 = vmatpush1.bf16.xpose.msra.mxu0 0
        %856 = vmatprep.subr.bf16.mxu0 0
        %857 = vmatpush1.bf16.xpose.msra.mxu0 0
        %858 = vmatprep.subr.bf16.mxu0 0
        %859 = vmatpush1.bf16.xpose.msra.mxu0 0
        %860 = vmatprep.subr.bf16.mxu0 0
        %861 = vmatpush1.bf16.xpose.msra.mxu0 0
        %862 = vmatprep.subr.bf16.mxu0 0
        %863 = vmatpush1.bf16.xpose.msra.mxu0 0
        %864 = vmatprep.subr.bf16.mxu0 0
        %865 = vmatpush1.bf16.xpose.msra.mxu0 0
        %866 = vmatprep.subr.bf16.mxu0 0
        %867 = vmatpush1.bf16.xpose.msra.mxu0 0
        %868 = vmatprep.subr.bf16.mxu0 0
        %869 = vmatpush1.bf16.xpose.msra.mxu0 0
        %870 = vmatprep.subr.bf16.mxu0 0
        %871 = vmatpush1.bf16.xpose.msra.mxu0 0
        %872 = vmatprep.subr.bf16.mxu0 0
        %873 = vmatpush1.bf16.xpose.msra.mxu0 0
        %874 = vmatprep.subr.bf16.mxu0 0
        %875 = vmatpush1.bf16.xpose.msra.mxu0 0
        %876 = vmatprep.subr.bf16.mxu0 0
        %877 = vmatpush1.bf16.xpose.msra.mxu0 0
        %878 = vmatprep.mubr.bf16.mxu0 0
        %879 = vmatmul.mubr.bf16.gmra.mrb[0].mxu0 %v841
        %v880 = vpop.f32.mrb[0].mxu0
        %v881 = vadd.f32 0.0, %v880
        %v882 = vpop.f32.mrb[0].mxu0
        %v883 = vpop.f32.mrb[0].mxu0
        %v884 = vpop.f32.mrb[0].mxu0
        %885 = vdwg.mxu0
        %v886 = vsel %vm839, %v881, -inf
        %887 = vmax.xlane.f32.xlu0 %v886
        %v888 = vpop.xlane.xlu0 %887
        %v889 = vsub.f32 %v881, %v888
        %v890 = vmul.f32 %v889, 1.442695
        %v891 = vpow.pop %v890
        %v892 = vsel %vm839, %v891, 0.0
        %893 = vadd.xlane.f32.xlu0 %v892
        %v894 = vpop.xlane.xlu0 %893
        %v895 = vrcp.pop %v894
        %v896 = vmul.f32 %v891, %v895
        %v897 = vpack.c.bf16 %v896, %v896
        %898 = vrot.lane.b32.xlu0 %v835, 64
        %v899 = vpop.permute.xlu0 %898
        %v901 = vsel %vm839, %v897, 0
        %vm903 = vcmask 1043456
        %v905 = vsel %vm903, %v899, 0
        %907 = vmatprep.subr.bf16.mxu0 0
        %908 = vmatpush1.bf16.msra.mxu0 %v905
        %909 = vmatprep.subr.bf16.mxu0 0
        %910 = vmatpush1.bf16.msra.mxu0 0
        %911 = vmatprep.subr.bf16.mxu0 0
        %912 = vmatpush1.bf16.msra.mxu0 0
        %913 = vmatprep.subr.bf16.mxu0 0
        %914 = vmatpush1.bf16.msra.mxu0 0
        %915 = vmatprep.subr.bf16.mxu0 0
        %916 = vmatpush1.bf16.msra.mxu0 0
        %917 = vmatprep.subr.bf16.mxu0 0
        %918 = vmatpush1.bf16.msra.mxu0 0
        %919 = vmatprep.subr.bf16.mxu0 0
        %920 = vmatpush1.bf16.msra.mxu0 0
        %921 = vmatprep.subr.bf16.mxu0 0
        %922 = vmatpush1.bf16.msra.mxu0 0
        %923 = vmatprep.subr.bf16.mxu0 0
        %924 = vmatpush1.bf16.msra.mxu0 0
        %925 = vmatprep.subr.bf16.mxu0 0
        %926 = vmatpush1.bf16.msra.mxu0 0
        %927 = vmatprep.subr.bf16.mxu0 0
        %928 = vmatpush1.bf16.msra.mxu0 0
        %929 = vmatprep.subr.bf16.mxu0 0
        %930 = vmatpush1.bf16.msra.mxu0 0
        %931 = vmatprep.subr.bf16.mxu0 0
        %932 = vmatpush1.bf16.msra.mxu0 0
        %933 = vmatprep.subr.bf16.mxu0 0
        %934 = vmatpush1.bf16.msra.mxu0 0
        %935 = vmatprep.subr.bf16.mxu0 0
        %936 = vmatpush1.bf16.msra.mxu0 0
        %937 = vmatprep.subr.bf16.mxu0 0
        %938 = vmatpush1.bf16.msra.mxu0 0
        %939 = vmatprep.mubr.bf16.mxu0 0
        %940 = vmatmul.mubr.bf16.gmra.mrb[0].mxu0 %v901
        %v941 = vpop.f32.mrb[0].mxu0
        %v942 = vadd.f32 0.0, %v941
        %v943 = vpop.f32.mrb[0].mxu0
        %v944 = vpop.f32.mrb[0].mxu0
        %v945 = vpop.f32.mrb[0].mxu0
        %946 = vdwg.mxu0
        %947 = vst.msk [vmem:[#allocation3] sm:$0xff] %vm839, %v942
        %949 = vrot.lane.b32.xlu0 %v834, 120
        %v950 = vpop.permute.xlu0 %949
        %951 = vrot.lane.b32.xlu0 %v835, 88
        %v952 = vpop.permute.xlu0 %951
        %v954 = vsel %vm839, %v950, 0
        %v957 = vsel %vm839, %v952, 0
        %959 = vmatprep.subr.bf16.mxu0 0
        %960 = vmatpush1.bf16.xpose.msra.mxu0 %v957
        %961 = vmatprep.subr.bf16.mxu0 0
        %962 = vmatpush1.bf16.xpose.msra.mxu0 0
        %963 = vmatprep.subr.bf16.mxu0 0
        %964 = vmatpush1.bf16.xpose.msra.mxu0 0
        %965 = vmatprep.subr.bf16.mxu0 0
        %966 = vmatpush1.bf16.xpose.msra.mxu0 0
        %967 = vmatprep.subr.bf16.mxu0 0
        %968 = vmatpush1.bf16.xpose.msra.mxu0 0
        %969 = vmatprep.subr.bf16.mxu0 0
        %970 = vmatpush1.bf16.xpose.msra.mxu0 0
        %971 = vmatprep.subr.bf16.mxu0 0
        %972 = vmatpush1.bf16.xpose.msra.mxu0 0
        %973 = vmatprep.subr.bf16.mxu0 0
        %974 = vmatpush1.bf16.xpose.msra.mxu0 0
        %975 = vmatprep.subr.bf16.mxu0 0
        %976 = vmatpush1.bf16.xpose.msra.mxu0 0
        %977 = vmatprep.subr.bf16.mxu0 0
        %978 = vmatpush1.bf16.xpose.msra.mxu0 0
        %979 = vmatprep.subr.bf16.mxu0 0
        %980 = vmatpush1.bf16.xpose.msra.mxu0 0
        %981 = vmatprep.subr.bf16.mxu0 0
        %982 = vmatpush1.bf16.xpose.msra.mxu0 0
        %983 = vmatprep.subr.bf16.mxu0 0
        %984 = vmatpush1.bf16.xpose.msra.mxu0 0
        %985 = vmatprep.subr.bf16.mxu0 0
        %986 = vmatpush1.bf16.xpose.msra.mxu0 0
        %987 = vmatprep.subr.bf16.mxu0 0
        %988 = vmatpush1.bf16.xpose.msra.mxu0 0
        %989 = vmatprep.subr.bf16.mxu0 0
        %990 = vmatpush1.bf16.xpose.msra.mxu0 0
        %991 = vmatprep.mubr.bf16.mxu0 0
        %992 = vmatmul.mubr.bf16.gmra.mrb[0].mxu0 %v954
        %v993 = vpop.f32.mrb[0].mxu0
        %v994 = vadd.f32 0.0, %v993
        %v995 = vpop.f32.mrb[0].mxu0
        %v996 = vpop.f32.mrb[0].mxu0
        %v997 = vpop.f32.mrb[0].mxu0
        %998 = vdwg.mxu0
        %v999 = vsel %vm839, %v994, -inf
        %1000 = vmax.xlane.f32.xlu0 %v999
        %v1001 = vpop.xlane.xlu0 %1000
        %v1002 = vsub.f32 %v994, %v1001
        %v1003 = vmul.f32 %v1002, 1.442695
        %v1004 = vpow.pop %v1003
        %v1005 = vsel %vm839, %v1004, 0.0
        %1006 = vadd.xlane.f32.xlu0 %v1005
        %v1007 = vpop.xlane.xlu0 %1006
        %v1008 = vrcp.pop %v1007
        %v1009 = vmul.f32 %v1004, %v1008
        %v1010 = vpack.c.bf16 %v1009, %v1009
        %1011 = vrot.lane.b32.xlu0 %v835, 56
        %v1012 = vpop.permute.xlu0 %1011
        %v1014 = vsel %vm839, %v1010, 0
        %v1017 = vsel %vm903, %v1012, 0
        %1019 = vmatprep.subr.bf16.mxu0 0
        %1020 = vmatpush1.bf16.msra.mxu0 %v1017
        %1021 = vmatprep.subr.bf16.mxu0 0
        %1022 = vmatpush1.bf16.msra.mxu0 0
        %1023 = vmatprep.subr.bf16.mxu0 0
        %1024 = vmatpush1.bf16.msra.mxu0 0
        %1025 = vmatprep.subr.bf16.mxu0 0
        %1026 = vmatpush1.bf16.msra.mxu0 0
        %1027 = vmatprep.subr.bf16.mxu0 0
        %1028 = vmatpush1.bf16.msra.mxu0 0
        %1029 = vmatprep.subr.bf16.mxu0 0
        %1030 = vmatpush1.bf16.msra.mxu0 0
        %1031 = vmatprep.subr.bf16.mxu0 0
        %1032 = vmatpush1.bf16.msra.mxu0 0
        %1033 = vmatprep.subr.bf16.mxu0 0
        %1034 = vmatpush1.bf16.msra.mxu0 0
        %1035 = vmatprep.subr.bf16.mxu0 0
        %1036 = vmatpush1.bf16.msra.mxu0 0
        %1037 = vmatprep.subr.bf16.mxu0 0
        %1038 = vmatpush1.bf16.msra.mxu0 0
        %1039 = vmatprep.subr.bf16.mxu0 0
        %1040 = vmatpush1.bf16.msra.mxu0 0
        %1041 = vmatprep.subr.bf16.mxu0 0
        %1042 = vmatpush1.bf16.msra.mxu0 0
        %1043 = vmatprep.subr.bf16.mxu0 0
        %1044 = vmatpush1.bf16.msra.mxu0 0
        %1045 = vmatprep.subr.bf16.mxu0 0
        %1046 = vmatpush1.bf16.msra.mxu0 0
        %1047 = vmatprep.subr.bf16.mxu0 0
        %1048 = vmatpush1.bf16.msra.mxu0 0
        %1049 = vmatprep.subr.bf16.mxu0 0
        %1050 = vmatpush1.bf16.msra.mxu0 0
        %1051 = vmatprep.mubr.bf16.mxu0 0
        %1052 = vmatmul.mubr.bf16.gmra.mrb[0].mxu0 %v1014
        %v1053 = vpop.f32.mrb[0].mxu0
        %v1054 = vadd.f32 0.0, %v1053
        %v1055 = vpop.f32.mrb[0].mxu0
        %v1056 = vpop.f32.mrb[0].mxu0
        %v1057 = vpop.f32.mrb[0].mxu0
        %1058 = vdwg.mxu0
        %1060 = vrot.lane.b32.xlu0 %v1054, 8
        %v1061 = vpop.permute.xlu0 %1060
        %vm1063 = vcmask 130112
        %1064 = vst.msk [vmem:[#allocation3] sm:$0xff] %vm1063, %v1061
        %1065 = vrot.lane.b32.xlu0 %v834, 112
        %v1066 = vpop.permute.xlu0 %1065
        %1067 = vrot.lane.b32.xlu0 %v835, 80
        %v1068 = vpop.permute.xlu0 %1067
        %v1070 = vsel %vm839, %v1066, 0
        %v1073 = vsel %vm839, %v1068, 0
        %1075 = vmatprep.subr.bf16.mxu0 0
        %1076 = vmatpush1.bf16.xpose.msra.mxu0 %v1073
        %1077 = vmatprep.subr.bf16.mxu0 0
        %1078 = vmatpush1.bf16.xpose.msra.mxu0 0
        %1079 = vmatprep.subr.bf16.mxu0 0
        %1080 = vmatpush1.bf16.xpose.msra.mxu0 0
        %1081 = vmatprep.subr.bf16.mxu0 0
        %1082 = vmatpush1.bf16.xpose.msra.mxu0 0
        %1083 = vmatprep.subr.bf16.mxu0 0
        %1084 = vmatpush1.bf16.xpose.msra.mxu0 0
        %1085 = vmatprep.subr.bf16.mxu0 0
        %1086 = vmatpush1.bf16.xpose.msra.mxu0 0
        %1087 = vmatprep.subr.bf16.mxu0 0
        %1088 = vmatpush1.bf16.xpose.msra.mxu0 0
        %1089 = vmatprep.subr.bf16.mxu0 0
        %1090 = vmatpush1.bf16.xpose.msra.mxu0 0
        %1091 = vmatprep.subr.bf16.mxu0 0
        %1092 = vmatpush1.bf16.xpose.msra.mxu0 0
        %1093 = vmatprep.subr.bf16.mxu0 0
        %1094 = vmatpush1.bf16.xpose.msra.mxu0 0
        %1095 = vmatprep.subr.bf16.mxu0 0
        %1096 = vmatpush1.bf16.xpose.msra.mxu0 0
        %1097 = vmatprep.subr.bf16.mxu0 0
        %1098 = vmatpush1.bf16.xpose.msra.mxu0 0
        %1099 = vmatprep.subr.bf16.mxu0 0
        %1100 = vmatpush1.bf16.xpose.msra.mxu0 0
        %1101 = vmatprep.subr.bf16.mxu0 0
        %1102 = vmatpush1.bf16.xpose.msra.mxu0 0
        %1103 = vmatprep.subr.bf16.mxu0 0
        %1104 = vmatpush1.bf16.xpose.msra.mxu0 0
        %1105 = vmatprep.subr.bf16.mxu0 0
        %1106 = vmatpush1.bf16.xpose.msra.mxu0 0
        %1107 = vmatprep.mubr.bf16.mxu0 0
        %1108 = vmatmul.mubr.bf16.gmra.mrb[0].mxu0 %v1070
        %v1109 = vpop.f32.mrb[0].mxu0
        %v1110 = vadd.f32 0.0, %v1109
        %v1111 = vpop.f32.mrb[0].mxu0
        %v1112 = vpop.f32.mrb[0].mxu0
        %v1113 = vpop.f32.mrb[0].mxu0
        %1114 = vdwg.mxu0
        %v1115 = vsel %vm839, %v1110, -inf
        %1116 = vmax.xlane.f32.xlu0 %v1115
        %v1117 = vpop.xlane.xlu0 %1116
        %v1118 = vsub.f32 %v1110, %v1117
        %v1119 = vmul.f32 %v1118, 1.442695
        %v1120 = vpow.pop %v1119
        %v1121 = vsel %vm839, %v1120, 0.0
        %1122 = vadd.xlane.f32.xlu0 %v1121
        %v1123 = vpop.xlane.xlu0 %1122
        %v1124 = vrcp.pop %v1123
        %v1125 = vmul.f32 %v1120, %v1124
        %v1126 = vpack.c.bf16 %v1125, %v1125
        %1127 = vrot.lane.b32.xlu0 %v835, 48
        %v1128 = vpop.permute.xlu0 %1127
        %v1130 = vsel %vm839, %v1126, 0
        %v1133 = vsel %vm903, %v1128, 0
        %1135 = vmatprep.subr.bf16.mxu0 0
        %1136 = vmatpush1.bf16.msra.mxu0 %v1133
        %1137 = vmatprep.subr.bf16.mxu0 0
        %1138 = vmatpush1.bf16.msra.mxu0 0
        %1139 = vmatprep.subr.bf16.mxu0 0
        %1140 = vmatpush1.bf16.msra.mxu0 0
        %1141 = vmatprep.subr.bf16.mxu0 0
        %1142 = vmatpush1.bf16.msra.mxu0 0
        %1143 = vmatprep.subr.bf16.mxu0 0
        %1144 = vmatpush1.bf16.msra.mxu0 0
        %1145 = vmatprep.subr.bf16.mxu0 0
        %1146 = vmatpush1.bf16.msra.mxu0 0
        %1147 = vmatprep.subr.bf16.mxu0 0
        %1148 = vmatpush1.bf16.msra.mxu0 0
        %1149 = vmatprep.subr.bf16.mxu0 0
        %1150 = vmatpush1.bf16.msra.mxu0 0
        %1151 = vmatprep.subr.bf16.mxu0 0
        %1152 = vmatpush1.bf16.msra.mxu0 0
        %1153 = vmatprep.subr.bf16.mxu0 0
        %1154 = vmatpush1.bf16.msra.mxu0 0
        %1155 = vmatprep.subr.bf16.mxu0 0
        %1156 = vmatpush1.bf16.msra.mxu0 0
        %1157 = vmatprep.subr.bf16.mxu0 0
        %1158 = vmatpush1.bf16.msra.mxu0 0
        %1159 = vmatprep.subr.bf16.mxu0 0
        %1160 = vmatpush1.bf16.msra.mxu0 0
        %1161 = vmatprep.subr.bf16.mxu0 0
        %1162 = vmatpush1.bf16.msra.mxu0 0
        %1163 = vmatprep.subr.bf16.mxu0 0
        %1164 = vmatpush1.bf16.msra.mxu0 0
        %1165 = vmatprep.subr.bf16.mxu0 0
        %1166 = vmatpush1.bf16.msra.mxu0 0
        %1167 = vmatprep.mubr.bf16.mxu0 0
        %1168 = vmatmul.mubr.bf16.gmra.mrb[0].mxu0 %v1130
        %v1169 = vpop.f32.mrb[0].mxu0
        %v1170 = vadd.f32 0.0, %v1169
        %v1171 = vpop.f32.mrb[0].mxu0
        %v1172 = vpop.f32.mrb[0].mxu0
        %v1173 = vpop.f32.mrb[0].mxu0
        %1174 = vdwg.mxu0
        %1176 = vrot.lane.b32.xlu0 %v1170, 16
        %v1177 = vpop.permute.xlu0 %1176
        %vm1179 = vcmask 195712
        %1180 = vst.msk [vmem:[#allocation3] sm:$0xff] %vm1179, %v1177
        %1181 = vrot.lane.b32.xlu0 %v834, 104
        %v1182 = vpop.permute.xlu0 %1181
        %1183 = vrot.lane.b32.xlu0 %v835, 72
        %v1184 = vpop.permute.xlu0 %1183
        %v1186 = vsel %vm839, %v1182, 0
        %v1189 = vsel %vm839, %v1184, 0
        %1191 = vmatprep.subr.bf16.mxu0 0
        %1192 = vmatpush1.bf16.xpose.msra.mxu0 %v1189
        %1193 = vmatprep.subr.bf16.mxu0 0
        %1194 = vmatpush1.bf16.xpose.msra.mxu0 0
        %1195 = vmatprep.subr.bf16.mxu0 0
        %1196 = vmatpush1.bf16.xpose.msra.mxu0 0
        %1197 = vmatprep.subr.bf16.mxu0 0
        %1198 = vmatpush1.bf16.xpose.msra.mxu0 0
        %1199 = vmatprep.subr.bf16.mxu0 0
        %1200 = vmatpush1.bf16.xpose.msra.mxu0 0
        %1201 = vmatprep.subr.bf16.mxu0 0
        %1202 = vmatpush1.bf16.xpose.msra.mxu0 0
        %1203 = vmatprep.subr.bf16.mxu0 0
        %1204 = vmatpush1.bf16.xpose.msra.mxu0 0
        %1205 = vmatprep.subr.bf16.mxu0 0
        %1206 = vmatpush1.bf16.xpose.msra.mxu0 0
        %1207 = vmatprep.subr.bf16.mxu0 0
        %1208 = vmatpush1.bf16.xpose.msra.mxu0 0
        %1209 = vmatprep.subr.bf16.mxu0 0
        %1210 = vmatpush1.bf16.xpose.msra.mxu0 0
        %1211 = vmatprep.subr.bf16.mxu0 0
        %1212 = vmatpush1.bf16.xpose.msra.mxu0 0
        %1213 = vmatprep.subr.bf16.mxu0 0
        %1214 = vmatpush1.bf16.xpose.msra.mxu0 0
        %1215 = vmatprep.subr.bf16.mxu0 0
        %1216 = vmatpush1.bf16.xpose.msra.mxu0 0
        %1217 = vmatprep.subr.bf16.mxu0 0
        %1218 = vmatpush1.bf16.xpose.msra.mxu0 0
        %1219 = vmatprep.subr.bf16.mxu0 0
        %1220 = vmatpush1.bf16.xpose.msra.mxu0 0
        %1221 = vmatprep.subr.bf16.mxu0 0
        %1222 = vmatpush1.bf16.xpose.msra.mxu0 0
        %1223 = vmatprep.mubr.bf16.mxu0 0
        %1224 = vmatmul.mubr.bf16.gmra.mrb[0].mxu0 %v1186
        %v1225 = vpop.f32.mrb[0].mxu0
        %v1226 = vadd.f32 0.0, %v1225
        %v1227 = vpop.f32.mrb[0].mxu0
        %v1228 = vpop.f32.mrb[0].mxu0
        %v1229 = vpop.f32.mrb[0].mxu0
        %1230 = vdwg.mxu0
        %v1231 = vsel %vm839, %v1226, -inf
        %1232 = vmax.xlane.f32.xlu0 %v1231
        %v1233 = vpop.xlane.xlu0 %1232
        %v1234 = vsub.f32 %v1226, %v1233
        %v1235 = vmul.f32 %v1234, 1.442695
        %v1236 = vpow.pop %v1235
        %v1237 = vsel %vm839, %v1236, 0.0
        %1238 = vadd.xlane.f32.xlu0 %v1237
        %v1239 = vpop.xlane.xlu0 %1238
        %v1240 = vrcp.pop %v1239
        %v1241 = vmul.f32 %v1236, %v1240
        %v1242 = vpack.c.bf16 %v1241, %v1241
        %1243 = vrot.lane.b32.xlu0 %v835, 40
        %v1244 = vpop.permute.xlu0 %1243
        %v1246 = vsel %vm839, %v1242, 0
        %v1249 = vsel %vm903, %v1244, 0
        %1251 = vmatprep.subr.bf16.mxu0 0
        %1252 = vmatpush1.bf16.msra.mxu0 %v1249
        %1253 = vmatprep.subr.bf16.mxu0 0
        %1254 = vmatpush1.bf16.msra.mxu0 0
        %1255 = vmatprep.subr.bf16.mxu0 0
        %1256 = vmatpush1.bf16.msra.mxu0 0
        %1257 = vmatprep.subr.bf16.mxu0 0
        %1258 = vmatpush1.bf16.msra.mxu0 0
        %1259 = vmatprep.subr.bf16.mxu0 0
        %1260 = vmatpush1.bf16.msra.mxu0 0
        %1261 = vmatprep.subr.bf16.mxu0 0
        %1262 = vmatpush1.bf16.msra.mxu0 0
        %1263 = vmatprep.subr.bf16.mxu0 0
        %1264 = vmatpush1.bf16.msra.mxu0 0
        %1265 = vmatprep.subr.bf16.mxu0 0
        %1266 = vmatpush1.bf16.msra.mxu0 0
        %1267 = vmatprep.subr.bf16.mxu0 0
        %1268 = vmatpush1.bf16.msra.mxu0 0
        %1269 = vmatprep.subr.bf16.mxu0 0
        %1270 = vmatpush1.bf16.msra.mxu0 0
        %1271 = vmatprep.subr.bf16.mxu0 0
        %1272 = vmatpush1.bf16.msra.mxu0 0
        %1273 = vmatprep.subr.bf16.mxu0 0
        %1274 = vmatpush1.bf16.msra.mxu0 0
        %1275 = vmatprep.subr.bf16.mxu0 0
        %1276 = vmatpush1.bf16.msra.mxu0 0
        %1277 = vmatprep.subr.bf16.mxu0 0
        %1278 = vmatpush1.bf16.msra.mxu0 0
        %1279 = vmatprep.subr.bf16.mxu0 0
        %1280 = vmatpush1.bf16.msra.mxu0 0
        %1281 = vmatprep.subr.bf16.mxu0 0
        %1282 = vmatpush1.bf16.msra.mxu0 0
        %1283 = vmatprep.mubr.bf16.mxu0 0
        %1284 = vmatmul.mubr.bf16.gmra.mrb[0].mxu0 %v1246
        %v1285 = vpop.f32.mrb[0].mxu0
        %v1286 = vadd.f32 0.0, %v1285
        %v1287 = vpop.f32.mrb[0].mxu0
        %v1288 = vpop.f32.mrb[0].mxu0
        %v1289 = vpop.f32.mrb[0].mxu0
        %1290 = vdwg.mxu0
        %1292 = vrot.lane.b32.xlu0 %v1286, 24
        %v1293 = vpop.permute.xlu0 %1292
        %vm1295 = vcmask 261312
        %1296 = vst.msk [vmem:[#allocation3] sm:$0xff] %vm1295, %v1293
        %v1297 = vld [vmem:[#allocation3] sm:$0xff]
        %v1298 = vpack.c.bf16 %v1297, %v1297
        %v1299 = vld [vmem:[%s654] sm:$0xf]
        %v1300 = vld [vmem:[%s654 + $0x4] sm:$0xf]
        %v1301 = vld [vmem:[%s654 + $0x8] sm:$0xf]
        %v1302 = vld [vmem:[%s654 + $0xc] sm:$0xf]
        %v1307 = vunpack.c.l.b16 %v1299
        %v1308 = vunpack.c.l.b16 %v1300
        %v1309 = vunpack.c.l.b16 %v1301
        %v1310 = vunpack.c.l.b16 %v1302
        %v1311 = vpack.c.b16 %v1308, %v1307
        %v1312 = vpack.c.b16 %v1310, %v1309
        %v1316 = vsel %vm744, %v1298, 0
        %1318 = vmatprep.subr.bf16.mxu0 0
        %1319 = vmatpush1.bf16.msra.mxu0 %v1311
        %1320 = vmatprep.subr.bf16.mxu0 0
        %1321 = vmatpush1.bf16.msra.mxu0 %v1312
        %1322 = vmatprep.subr.bf16.mxu0 0
        %1323 = vmatpush1.bf16.msra.mxu0 0
        %1324 = vmatprep.subr.bf16.mxu0 0
        %1325 = vmatpush1.bf16.msra.mxu0 0
        %1326 = vmatprep.subr.bf16.mxu0 0
        %1327 = vmatpush1.bf16.msra.mxu0 0
        %1328 = vmatprep.subr.bf16.mxu0 0
        %1329 = vmatpush1.bf16.msra.mxu0 0
        %1330 = vmatprep.subr.bf16.mxu0 0
        %1331 = vmatpush1.bf16.msra.mxu0 0
        %1332 = vmatprep.subr.bf16.mxu0 0
        %1333 = vmatpush1.bf16.msra.mxu0 0
        %1334 = vmatprep.subr.bf16.mxu0 0
        %1335 = vmatpush1.bf16.msra.mxu0 0
        %1336 = vmatprep.subr.bf16.mxu0 0
        %1337 = vmatpush1.bf16.msra.mxu0 0
        %1338 = vmatprep.subr.bf16.mxu0 0
        %1339 = vmatpush1.bf16.msra.mxu0 0
        %1340 = vmatprep.subr.bf16.mxu0 0
        %1341 = vmatpush1.bf16.msra.mxu0 0
        %1342 = vmatprep.subr.bf16.mxu0 0
        %1343 = vmatpush1.bf16.msra.mxu0 0
        %1344 = vmatprep.subr.bf16.mxu0 0
        %1345 = vmatpush1.bf16.msra.mxu0 0
        %1346 = vmatprep.subr.bf16.mxu0 0
        %1347 = vmatpush1.bf16.msra.mxu0 0
        %1348 = vmatprep.subr.bf16.mxu0 0
        %1349 = vmatpush1.bf16.msra.mxu0 0
        %1350 = vmatprep.mubr.bf16.mxu0 0
        %1351 = vmatmul.mubr.bf16.gmra.mrb[0].mxu0 %v1316
        %v1352 = vpop.f32.mrb[0].mxu0
        %v1353 = vadd.f32 0.0, %v1352
        %v1354 = vpop.f32.mrb[0].mxu0
        %v1355 = vpop.f32.mrb[0].mxu0
        %v1356 = vpop.f32.mrb[0].mxu0
        %1357 = vdwg.mxu0
        %v1358 = vadd.f32 %v741, %v1353
        %v1359 = vld [vmem:[%s657] sm:$0x1]
        %v1361 = vlaneseq
        %v1362 = vshrl.u32 %v1361, 7
        %v1363 = vsub.s32 0, %v1362
        %v1364 = vrot.slane %v1359, %v1363
        %v1366 = vadd.f32 %v1358, %v1364
        %v1367 = vld [vmem:[%s660] sm:$0x1]
        %v1368 = vld [vmem:[%s663] sm:$0x1]
        %v1369 = vsel %vm744, %v1366, 0.0
        %1370 = vadd.xlane.f32.xlu0 %v1369
        %v1371 = vpop.xlane.xlu0 %1370
        %v1372 = vmul.f32 %v1371, %v748
        %v1373 = vsub.f32 %v1366, %v1372
        %v1374 = vmul.f32 %v1373, %v1373
        %v1375 = vsel %vm744, %v1374, 0.0
        %1376 = vadd.xlane.f32.xlu0 %v1375
        %v1377 = vpop.xlane.xlu0 %1376
        %v1378 = vmul.f32 %v1377, %v748
        %v1379 = vadd.f32 %v1378, 1e-05
        %v1380 = vrsqrt.pop %v1379
        %v1381 = vmul.f32 %v1373, %v1380
        %v1383 = vlaneseq
        %v1384 = vshrl.u32 %v1383, 7
        %v1385 = vsub.s32 0, %v1384
        %v1386 = vrot.slane %v1367, %v1385
        %v1388 = vmul.f32 %v1381, %v1386
        %v1390 = vlaneseq
        %v1391 = vshrl.u32 %v1390, 7
        %v1392 = vsub.s32 0, %v1391
        %v1393 = vrot.slane %v1368, %v1392
        %v1395 = vadd.f32 %v1388, %v1393
        %v1396 = vpack.c.bf16 %v1395, %v1395
        %v1397 = vld [vmem:[%s668] sm:$0xf]
        %v1398 = vld [vmem:[%s668 + $0x4] sm:$0xf]
        %v1399 = vld [vmem:[%s668 + $0x8] sm:$0xf]
        %v1400 = vld [vmem:[%s668 + $0xc] sm:$0xf]
        %v1401 = vld [vmem:[%s671] sm:$0x1]
        %v1403 = vlaneseq
        %v1404 = vshrl.u32 %v1403, 7
        %v1405 = vsub.s32 0, %v1404
        %v1406 = vrot.slane %v1401, %v1405
        %v1412 = vunpack.c.l.b16 %v1397
        %v1413 = vunpack.c.l.b16 %v1398
        %v1414 = vunpack.c.l.b16 %v1399
        %v1415 = vunpack.c.l.b16 %v1400
        %v1416 = vpack.c.b16 %v1413, %v1412
        %v1417 = vpack.c.b16 %v1415, %v1414
        %v1421 = vsel %vm744, %v1396, 0
        %1423 = vmatprep.subr.bf16.mxu0 0
        %1424 = vmatpush1.bf16.msra.mxu0 %v1416
        %1425 = vmatprep.subr.bf16.mxu0 0
        %1426 = vmatpush1.bf16.msra.mxu0 %v1417
        %1427 = vmatprep.subr.bf16.mxu0 0
        %1428 = vmatpush1.bf16.msra.mxu0 0
        %1429 = vmatprep.subr.bf16.mxu0 0
        %1430 = vmatpush1.bf16.msra.mxu0 0
        %1431 = vmatprep.subr.bf16.mxu0 0
        %1432 = vmatpush1.bf16.msra.mxu0 0
        %1433 = vmatprep.subr.bf16.mxu0 0
        %1434 = vmatpush1.bf16.msra.mxu0 0
        %1435 = vmatprep.subr.bf16.mxu0 0
        %1436 = vmatpush1.bf16.msra.mxu0 0
        %1437 = vmatprep.subr.bf16.mxu0 0
        %1438 = vmatpush1.bf16.msra.mxu0 0
        %1439 = vmatprep.subr.bf16.mxu0 0
        %1440 = vmatpush1.bf16.msra.mxu0 0
        %1441 = vmatprep.subr.bf16.mxu0 0
        %1442 = vmatpush1.bf16.msra.mxu0 0
        %1443 = vmatprep.subr.bf16.mxu0 0
        %1444 = vmatpush1.bf16.msra.mxu0 0
        %1445 = vmatprep.subr.bf16.mxu0 0
        %1446 = vmatpush1.bf16.msra.mxu0 0
        %1447 = vmatprep.subr.bf16.mxu0 0
        %1448 = vmatpush1.bf16.msra.mxu0 0
        %1449 = vmatprep.subr.bf16.mxu0 0
        %1450 = vmatpush1.bf16.msra.mxu0 0
        %1451 = vmatprep.subr.bf16.mxu0 0
        %1452 = vmatpush1.bf16.msra.mxu0 0
        %1453 = vmatprep.subr.bf16.mxu0 0
        %1454 = vmatpush1.bf16.msra.mxu0 0
        %1455 = vmatprep.mubr.bf16.mxu0 0
        %1456 = vmatmul.mubr.bf16.gmra.mrb[0].mxu0 %v1421
        %v1457 = vpop.f32.mrb[0].mxu0
        %v1458 = vadd.f32 %v1406, %v1457
        %v1459 = vpop.f32.mrb[0].mxu0
        %v1460 = vpop.f32.mrb[0].mxu0
        %v1461 = vpop.f32.mrb[0].mxu0
        %1462 = vdwg.mxu0
        %v1463 = vmul.f32 %v1458, 0.5
        %v1464 = vmul.f32 %v1458, 0.044715
        %v1465 = vmul.f32 %v1464, %v1458
        %v1466 = vmul.f32 %v1465, %v1458
        %v1467 = vadd.f32 %v1458, %v1466
        %v1468 = vmul.f32 %v1467, 0.7978846
        %v1469 = vtanh.pop %v1468
        %v1470 = vadd.f32 %v1469, 1.0
        %v1471 = vmul.f32 %v1463, %v1470
        %v1472 = vpack.c.bf16 %v1471, %v1471
        %v1473 = vld [vmem:[%s676] sm:$0xf]
        %v1474 = vld [vmem:[%s676 + $0x4] sm:$0xf]
        %v1475 = vld [vmem:[%s676 + $0x8] sm:$0xf]
        %v1476 = vld [vmem:[%s676 + $0xc] sm:$0xf]
        %v1477 = vld [vmem:[%s676 + $0x10] sm:$0xf]
        %v1478 = vld [vmem:[%s676 + $0x14] sm:$0xf]
        %v1479 = vld [vmem:[%s676 + $0x18] sm:$0xf]
        %v1480 = vld [vmem:[%s676 + $0x1c] sm:$0xf]
        %v1481 = vld [vmem:[%s676 + $0x20] sm:$0xf]
        %v1482 = vld [vmem:[%s676 + $0x24] sm:$0xf]
        %v1483 = vld [vmem:[%s676 + $0x28] sm:$0xf]
        %v1484 = vld [vmem:[%s676 + $0x2c] sm:$0xf]
        %v1485 = vld [vmem:[%s676 + $0x30] sm:$0xf]
        %v1486 = vld [vmem:[%s676 + $0x34] sm:$0xf]
        %v1487 = vld [vmem:[%s676 + $0x38] sm:$0xf]
        %v1488 = vld [vmem:[%s676 + $0x3c] sm:$0xf]
        %v1505 = vunpack.c.l.b16 %v1473
        %v1506 = vunpack.c.l.b16 %v1474
        %v1507 = vunpack.c.l.b16 %v1475
        %v1508 = vunpack.c.l.b16 %v1476
        %v1509 = vunpack.c.l.b16 %v1477
        %v1510 = vunpack.c.l.b16 %v1478
        %v1511 = vunpack.c.l.b16 %v1479
        %v1512 = vunpack.c.l.b16 %v1480
        %v1513 = vunpack.c.l.b16 %v1481
        %v1514 = vunpack.c.l.b16 %v1482
        %v1515 = vunpack.c.l.b16 %v1483
        %v1516 = vunpack.c.l.b16 %v1484
        %v1517 = vunpack.c.l.b16 %v1485
        %v1518 = vunpack.c.l.b16 %v1486
        %v1519 = vunpack.c.l.b16 %v1487
        %v1520 = vunpack.c.l.b16 %v1488
        %v1521 = vpack.c.b16 %v1506, %v1505
        %v1522 = vpack.c.b16 %v1508, %v1507
        %v1523 = vpack.c.b16 %v1510, %v1509
        %v1524 = vpack.c.b16 %v1512, %v1511
        %v1525 = vpack.c.b16 %v1514, %v1513
        %v1526 = vpack.c.b16 %v1516, %v1515
        %v1527 = vpack.c.b16 %v1518, %v1517
        %v1528 = vpack.c.b16 %v1520, %v1519
        %1537 = vmatprep.subr.bf16.mxu0 0
        %1538 = vmatpush1.bf16.msra.mxu0 %v1521
        %1539 = vmatprep.subr.bf16.mxu0 0
        %1540 = vmatpush1.bf16.msra.mxu0 %v1522
        %1541 = vmatprep.subr.bf16.mxu0 0
        %1542 = vmatpush1.bf16.msra.mxu0 %v1523
        %1543 = vmatprep.subr.bf16.mxu0 0
        %1544 = vmatpush1.bf16.msra.mxu0 %v1524
        %1545 = vmatprep.subr.bf16.mxu0 0
        %1546 = vmatpush1.bf16.msra.mxu0 %v1525
        %1547 = vmatprep.subr.bf16.mxu0 0
        %1548 = vmatpush1.bf16.msra.mxu0 %v1526
        %1549 = vmatprep.subr.bf16.mxu0 0
        %1550 = vmatpush1.bf16.msra.mxu0 %v1527
        %1551 = vmatprep.subr.bf16.mxu0 0
        %1552 = vmatpush1.bf16.msra.mxu0 %v1528
        %1553 = vmatprep.subr.bf16.mxu0 0
        %1554 = vmatpush1.bf16.msra.mxu0 0
        %1555 = vmatprep.subr.bf16.mxu0 0
        %1556 = vmatpush1.bf16.msra.mxu0 0
        %1557 = vmatprep.subr.bf16.mxu0 0
        %1558 = vmatpush1.bf16.msra.mxu0 0
        %1559 = vmatprep.subr.bf16.mxu0 0
        %1560 = vmatpush1.bf16.msra.mxu0 0
        %1561 = vmatprep.subr.bf16.mxu0 0
        %1562 = vmatpush1.bf16.msra.mxu0 0
        %1563 = vmatprep.subr.bf16.mxu0 0
        %1564 = vmatpush1.bf16.msra.mxu0 0
        %1565 = vmatprep.subr.bf16.mxu0 0
        %1566 = vmatpush1.bf16.msra.mxu0 0
        %1567 = vmatprep.subr.bf16.mxu0 0
        %1568 = vmatpush1.bf16.msra.mxu0 0
        %1569 = vmatprep.mubr.bf16.mxu0 0
        %1570 = vmatmul.mubr.bf16.gmra.mrb[0].mxu0 %v1472
        %v1571 = vpop.f32.mrb[0].mxu0
        %v1572 = vadd.f32 0.0, %v1571
        %v1573 = vpop.f32.mrb[0].mxu0
        %v1574 = vpop.f32.mrb[0].mxu0
        %v1575 = vpop.f32.mrb[0].mxu0
        %1576 = vdwg.mxu0
        %v1577 = vadd.f32 %v1366, %v1572
        %v1578 = vld [vmem:[%s679] sm:$0x1]
        %v1580 = vlaneseq
        %v1581 = vshrl.u32 %v1580, 7
        %v1582 = vsub.s32 0, %v1581
        %v1583 = vrot.slane %v1578, %v1582
        %v1585 = vadd.f32 %v1577, %v1583
        %1586 = vst.msk [vmem:[#allocation2] sm:$0xff] %vm744, %v1585
        %p1587 = scmp.eq.s32.totalorder %s34, 1
        // Predicated region
        $region85: #{predictor_pallas.1} parent=79 // pred_check
          %p1588 = pneg %p1587
        $region86: #{predictor_pallas.1} parent=79 // pred_check_branch
          %1590 = sbr.rel (%p1588) target = $region88
        $region87: #{predictor_pallas.1} parent=79 // pred_region
          %v1591 = vld [vmem:[%s13] sm:$0x1]
          %v1592 = vld [vmem:[%s14] sm:$0x1]
          %v1593 = vsel %vm744, %v1585, 0.0
          %1594 = vadd.xlane.f32.xlu0 %v1593
          %v1595 = vpop.xlane.xlu0 %1594
          %v1596 = vmul.f32 %v1595, %v748
          %v1597 = vsub.f32 %v1585, %v1596
          %v1598 = vmul.f32 %v1597, %v1597
          %v1599 = vsel %vm744, %v1598, 0.0
          %1600 = vadd.xlane.f32.xlu0 %v1599
          %v1601 = vpop.xlane.xlu0 %1600
          %v1602 = vmul.f32 %v1601, %v748
          %v1603 = vadd.f32 %v1602, 1e-05
          %v1604 = vrsqrt.pop %v1603
          %v1605 = vmul.f32 %v1597, %v1604
          %v1607 = vlaneseq
          %v1608 = vshrl.u32 %v1607, 7
          %v1609 = vsub.s32 0, %v1608
          %v1610 = vrot.slane %v1591, %v1609
          %v1612 = vmul.f32 %v1605, %v1610
          %v1614 = vlaneseq
          %v1615 = vshrl.u32 %v1614, 7
          %v1616 = vsub.s32 0, %v1615
          %v1617 = vrot.slane %v1592, %v1616
          %v1619 = vadd.f32 %v1612, %v1617
          %1620 = vst.msk [vmem:[%s634] sm:$0xff] %vm744, %v1619
        $region88: #{predictor_pallas.1} parent=79 // pred_fallthru
          _
        %s1621 = sand.u32 %s424, 1
        %s1622 = scalar_lea.sflag [#allocation5], %s1621
        %s1623 = sand.u32 %s424, 1
        %s1624 = smul.addr %s1623, 8
        %s1625 = scalar_lea.vmem [#allocation4], %s1624
        // Predicated region
        $region89: #{predictor_pallas.1} parent=79 // pred_check
          %p1626 = pneg %p434
        $region90: #{predictor_pallas.1} parent=79 // pred_check_branch
          %1628 = sbr.rel (%p1626) target = $region92
        $region91: #{predictor_pallas.1} parent=79 // pred_region
          %s1630 = ssub.s32 128, 128
          %1631 = vsyncadd %s1622, %s1630
          %s1632 = smul.addr %s33, 128
          %s1633 = scalar_lea.hbm %s15, %s1632
          %s1635 = sshll.u32 %s1625, 4
          %s1636 = int_to_ptr.vmem [resolvable:$true] %s1635
          %1638 = dma.vmem_to_hbm [thread:$0]  %s1636, 128, %s1633, %s1622
        $region92: #{predictor_pallas.1} parent=79 // pred_fallthru
          _
      $region80: #{predictor_pallas.1} parent=5 // pred_fallthru
        _
      %p1639 = scmp.le.s32.totalorder 2, %s24
      // Predicated region
      $region93: #{predictor_pallas.1} parent=5 // pred_check
        %p1640 = pneg %p1639
      $region94: #{predictor_pallas.1} parent=5 // pred_check_branch
        %1642 = sbr.rel (%p1640) target = $region96
      $region95: #{predictor_pallas.1} parent=5 // pred_region
        %s1643 = ssub.s32 %s24, 2
        // Predicated region
        $region97: #{predictor_pallas.1} parent=95 // pred_check
          %p1644 = pneg %p440
        $region98: #{predictor_pallas.1} parent=95 // pred_check_branch
          %1646 = sbr.rel (%p1644) target = $region100
        $region99: #{predictor_pallas.1} parent=95 // pred_region
          %s1647 = sand.u32 %s425, 1
          %s1648 = scalar_lea.sflag [#allocation5], %s1647
          %s1649 = sand.u32 %s425, 1
          %s1650 = smul.addr %s1649, 8
          %s1651 = scalar_lea.vmem [#allocation4], %s1650
          %1652 = dma.done %s1648, 128
        $region100: #{predictor_pallas.1} parent=95 // pred_fallthru
          _
      $region96: #{predictor_pallas.1} parent=5 // pred_fallthru
        _
    $region6: #{predictor_pallas.1} parent=1 // loop_footer
      %s28 = sadd.s32 1, %s24
    $region7: #{predictor_pallas.1} parent=1 // loop_footer_branch
      %23 = sbr.rel target = $region3
    $region8: #{predictor_pallas.1} parent=1 // loop_exit
      _
    %1653 = vsyncpa [#allocation5], 1
    %s1654 = scalar_lea.sflag [#allocation5], 1
    %1655 = vsyncpa %s1654, 1

</llo_original>
